<compile_context>
chip_gen: v7x
topology: tpu7x:2x2x1
jax: 0.10.0
libtpu: 0.0.40
codegen_flags: <defaults>
</compile_context>

<pallas_src>
import functools

import jax
import jax.numpy as jnp
from jax import lax
from jax.experimental import pallas as pl
from jax.experimental.pallas import tpu as pltpu

BN_EPS = 1e-5


def _round_up(v, m):
    return ((v + m - 1) // m) * m


def _pick_row_tile(npad):
    for t in (512, 256, 128):
        if npad % t == 0:
            return min(t, npad)
    return npad


def _vmem_limit_bytes():
    """Generation-aware VMEM budget (~5/8 of physical: 40 MiB v7x, 80 MiB v5e/v6e)."""
    try:
        info = pltpu.get_tpu_info()
        cap = None
        for name in ("vmem_capacity_bytes", "vmem_size_bytes", "vmem_bytes"):
            cap = getattr(info, name, None)
            if cap:
                break
        if not cap:
            raise ValueError("no vmem capacity attribute")
        limit = max(32 * 1024 * 1024, (int(cap) * 5) // 8)
        return int(min(limit, 100 * 1024 * 1024))
    except Exception:
        return 40 * 1024 * 1024  # safe on every generation (v7x physical = 64 MiB)


_VMEM_LIMIT_BYTES = _vmem_limit_bytes()


# --------------------------------------------------------------------------
# Fused Pallas kernel: GIN encoder + per-layer pooling + projection head
# grid = (num_layers, num_row_stripes); both axes carry dependencies.
# --------------------------------------------------------------------------
def _make_fused_kernel(num_layers, tile_n, hpad, gpad, inv_n):
    def kernel(adj_ref, x_ref, mask_ref, pool_ref, cnt_ref,
               w1_ref, b1_ref, w2_ref, b2_ref, gamma_ref, beta_ref,
               pw1_ref, pb1_ref, pw2_ref, pb2_ref,
               out_ref,
               h_in, h_out, stats, pooled):
        l = pl.program_id(0)
        i = pl.program_id(1)
        n_tiles = pl.num_programs(1)

        # ---------------- prologue ----------------
        @pl.when(jnp.logical_and(l == 0, i == 0))
        def _init_features():
            h_in[...] = x_ref[...]          # bf16 node features, copied once

        @pl.when(i == 0)
        def _init_layer():
            stats[...] = jnp.zeros_like(stats)
            pooled[l] = jnp.zeros((gpad, hpad), jnp.float32)

        # ---------------- per-row-stripe compute ----------------
        # GIN aggregation: self term is folded into adj (A + I), bf16 MXU
        # inputs with f32 accumulation.
        agg = jnp.dot(adj_ref[...], h_in[...],
                      preferred_element_type=jnp.float32)          # (tile_n, Dpad)

        # GIN internal MLP: Linear -> ReLU -> Linear, then the outer F.relu
        z = jnp.dot(agg.astype(jnp.bfloat16), w1_ref[0],
                    preferred_element_type=jnp.float32) + b1_ref[0]
        z = jnp.maximum(z, 0.0)
        z = jnp.dot(z.astype(jnp.bfloat16), w2_ref[0],
                    preferred_element_type=jnp.float32) + b2_ref[0]
        z = jnp.maximum(z, 0.0)

        # BatchNorm batch statistics over REAL nodes only (row mask), one pass
        zm = z * mask_ref[...]
        stats[0:1, :] += jnp.sum(zm, axis=0, keepdims=True)
        stats[1:2, :] += jnp.sum(zm * z, axis=0, keepdims=True)

        z_bf = z.astype(jnp.bfloat16)

        # per-graph partial sums of the raw (pre-BN) activations of this stripe
        pooled[l] = pooled[l] + jnp.dot(pool_ref[...], z_bf,
                                        preferred_element_type=jnp.float32)

        # stash raw z rows; the BN affine is applied lazily at layer end
        row0 = pl.multiple_of(i * tile_n, tile_n)
        h_out[pl.ds(row0, tile_n), :] = z

        # ---------------- layer epilogue (last stripe of the layer) ----------
        @pl.when(i == n_tiles - 1)
        def _finish_layer():
            mean = stats[0:1, :] * inv_n
            var = jnp.maximum(stats[1:2, :] * inv_n - mean * mean, 0.0)
            a = gamma_ref[0] * lax.rsqrt(var + BN_EPS)
            b = beta_ref[0] - mean * a

            # global_add_pool(BN(z)) == pool(z) * a + (#real nodes per graph) * b
            pooled[l] = pooled[l] * a + cnt_ref[...] * b

            @pl.when(l < num_layers - 1)
            def _next_layer_input():
                # normalize + downcast once; becomes next layer's bf16 input.
                h_in[:, :hpad] = (h_out[...] * a + b).astype(jnp.bfloat16)
                # columns [hpad:Dpad] (if any) only ever multiply zero-padded
                # weight rows, so they may stay stale.

            @pl.when(l == num_layers - 1)
            def _projection_head():
                y = jnp.concatenate([pooled[j] for j in range(num_layers)],
                                    axis=1)
                y = jnp.dot(y.astype(jnp.bfloat16), pw1_ref[...],
                            preferred_element_type=jnp.float32) + pb1_ref[...]
                y = jnp.maximum(y, 0.0)
                out_ref[...] = jnp.dot(y.astype(jnp.bfloat16), pw2_ref[...],
                                       preferred_element_type=jnp.float32) + pb2_ref[...]

    return kernel


# --------------------------------------------------------------------------
# Parameter initialization (mirrors init_emb: xavier_uniform on every Linear
# weight, zero biases; BatchNorm gamma=1, beta=0)
# --------------------------------------------------------------------------
def xavier_uniform(key, fan_in, fan_out):
    bound = (6.0 / (fan_in + fan_out)) ** 0.5
    # stored as [in, out] so the kernel computes y = x @ W + b
    return jax.random.uniform(key, (fan_in, fan_out), jnp.float32, -bound, bound)


def init_params(key, num_features, hidden_dim, num_gc_layers):
    params = {"encoder": [], "proj_head": {}}
    for layer in range(num_gc_layers):
        fin = num_features if layer == 0 else hidden_dim
        key, k1, k2 = jax.random.split(key, 3)
        params["encoder"].append({
            "w1": xavier_uniform(k1, fin, hidden_dim),
            "b1": jnp.zeros((1, hidden_dim), jnp.float32),
            "w2": xavier_uniform(k2, hidden_dim, hidden_dim),
            "b2": jnp.zeros((1, hidden_dim), jnp.float32),
            "gamma": jnp.ones((1, hidden_dim), jnp.float32),
            "beta": jnp.zeros((1, hidden_dim), jnp.float32),
        })
    emb = hidden_dim * num_gc_layers
    key, k1, k2 = jax.random.split(key, 3)
    params["proj_head"] = {
        "w1": xavier_uniform(k1, emb, emb),
        "b1": jnp.zeros((1, emb), jnp.float32),
        "w2": xavier_uniform(k2, emb, emb),
        "b2": jnp.zeros((1, emb), jnp.float32),
    }
    return params


# --------------------------------------------------------------------------
# Full forward pass: padding / layout prep in plain JAX, one fused Pallas call
# --------------------------------------------------------------------------
@functools.partial(jax.jit, static_argnames=("num_graphs",))
def simclr_graph_cl_forward(params, x, edge_index, batch, num_graphs):
    enc = params["encoder"]
    num_layers = len(enc)
    N, F = x.shape
    H = enc[0]["w2"].shape[1]
    E = H * num_layers

    # lane/sublane aligned padded sizes
    Npad = _round_up(N, 128)
    Fpad = _round_up(F, 128)
    Hpad = _round_up(H, 128)
    Dpad = max(Fpad, Hpad)          # unified node-feature width for every layer
    Gpad = _round_up(num_graphs, 8)
    Epad = _round_up(E, 128)
    Wide = num_layers * Hpad        # layer-blocked concat width inside the kernel

    tile_n = _pick_row_tile(Npad)
    n_tiles = Npad // tile_n

    src, dst = edge_index[0], edge_index[1]
    ids = jnp.arange(N, dtype=jnp.int32)
    # Dense adjacency with the GIN self term folded in:
    #   A[i, j] = multiplicity(j -> i) + (i == j), built directly as bf16
    # (exact for edge multiplicities < 256).
    adj = (jnp.zeros((Npad, Npad), jnp.bfloat16)
           .at[dst, src].add(jnp.ones(src.shape, jnp.bfloat16))
           .at[ids, ids].add(jnp.ones((N,), jnp.bfloat16)))

    x_pad = jnp.pad(x, ((0, Npad - N), (0, Dpad - F))).astype(jnp.bfloat16)
    mask = (jnp.arange(Npad) < N).astype(jnp.float32)[:, None]

    batch_pad = jnp.pad(batch, (0, Npad - N), constant_values=-1)
    pool = (batch_pad[None, :] == jnp.arange(Gpad)[:, None]).astype(jnp.bfloat16)
    counts = jnp.sum(pool.astype(jnp.float32), axis=1, keepdims=True)  # (Gpad, 1)

    # per-layer parameters stacked along a leading layer axis, indexed by the
    # layer grid dimension through the BlockSpec index_map
    w1s, b1s, w2s, b2s, gms, bts = [], [], [], [], [], []
    for layer, lp in enumerate(enc):
        din = F if layer == 0 else H
        w1s.append(jnp.pad(lp["w1"], ((0, Dpad - din), (0, Hpad - H))))
        b1s.append(jnp.pad(lp["b1"], ((0, 0), (0, Hpad - H))))
        w2s.append(jnp.pad(lp["w2"], ((0, Hpad - H), (0, Hpad - H))))
        b2s.append(jnp.pad(lp["b2"], ((0, 0), (0, Hpad - H))))
        gms.append(jnp.pad(lp["gamma"], ((0, 0), (0, Hpad - H))))
        bts.append(jnp.pad(lp["beta"], ((0, 0), (0, Hpad - H))))
    w1s = jnp.stack(w1s).astype(jnp.bfloat16)            # (L, Dpad, Hpad)
    w2s = jnp.stack(w2s).astype(jnp.bfloat16)            # (L, Hpad, Hpad)
    b1s = jnp.stack(b1s)                                  # (L, 1, Hpad) f32
    b2s = jnp.stack(b2s)
    gms = jnp.stack(gms)
    bts = jnp.stack(bts)

    # Projection-head weights remapped to the "wide" layer-blocked concat
    # layout: original input row l*H + j  ->  wide row l*Hpad + j.
    ph = params["proj_head"]
    pw1 = jnp.pad(ph["w1"].reshape(num_layers, H, E),
                  ((0, 0), (0, Hpad - H), (0, Epad - E)))
    pw1 = pw1.reshape(Wide, Epad).astype(jnp.bfloat16)
    pb1 = jnp.pad(ph["b1"], ((0, 0), (0, Epad - E)))
    pw2 = jnp.pad(ph["w2"], ((0, Epad - E), (0, Epad - E))).astype(jnp.bfloat16)
    pb2 = jnp.pad(ph["b2"], ((0, 0), (0, Epad - E)))

    kernel = _make_fused_kernel(num_layers, tile_n, Hpad, Gpad, 1.0 / N)

    grid = (num_layers, n_tiles)
    in_specs = [
        # adjacency row stripe: streamed / double-buffered, re-read per layer
        pl.BlockSpec((tile_n, Npad), lambda l, i: (i, 0)),
        # node features (consumed only by the very first grid step)
        pl.BlockSpec((Npad, Dpad), lambda l, i: (0, 0)),
        # real-node row mask of this stripe
        pl.BlockSpec((tile_n, 1), lambda l, i: (i, 0)),
        # graph-membership one-hot columns of this stripe
        pl.BlockSpec((Gpad, tile_n), lambda l, i: (0, i)),
        # per-graph real node counts (resident)
        pl.BlockSpec((Gpad, 1), lambda l, i: (0, 0)),
        # per-layer weights / BN params, indexed by the layer grid axis
        pl.BlockSpec((1, Dpad, Hpad), lambda l, i: (l, 0, 0)),
        pl.BlockSpec((1, 1, Hpad), lambda l, i: (l, 0, 0)),
        pl.BlockSpec((1, Hpad, Hpad), lambda l, i: (l, 0, 0)),
        pl.BlockSpec((1, 1, Hpad), lambda l, i: (l, 0, 0)),
        pl.BlockSpec((1, 1, Hpad), lambda l, i: (l, 0, 0)),
        pl.BlockSpec((1, 1, Hpad), lambda l, i: (l, 0, 0)),
        # projection head (resident)
        pl.BlockSpec((Wide, Epad), lambda l, i: (0, 0)),
        pl.BlockSpec((1, Epad), lambda l, i: (0, 0)),
        pl.BlockSpec((Epad, Epad), lambda l, i: (0, 0)),
        pl.BlockSpec((1, Epad), lambda l, i: (0, 0)),
    ]
    out_spec = pl.BlockSpec((Gpad, Epad), lambda l, i: (0, 0))

    scratch_shapes = [
        pltpu.VMEM((Npad, Dpad), jnp.bfloat16),              # h_in (layer input)
        pltpu.VMEM((Npad, Hpad), jnp.float32),                # h_out (raw pre-BN z)
        pltpu.VMEM((2, Hpad), jnp.float32),                   # BN sum / sum-of-sq
        pltpu.VMEM((num_layers, Gpad, Hpad), jnp.float32),    # per-layer pooled
    ]

    flops = (num_layers * 2 * Npad * Npad * Dpad
             + num_layers * 2 * Npad * (Dpad * Hpad + Hpad * Hpad)
             + num_layers * 2 * Gpad * Npad * Hpad
             + 2 * Gpad * Wide * Epad + 2 * Gpad * Epad * Epad)
    bytes_accessed = (num_layers * Npad * Npad * 2           # adj re-streamed / layer
                      + Npad * Dpad * 2 + Npad * 4 + Gpad * Npad * 2
                      + 2 * (int(w1s.size) + int(w2s.size) + int(pw1.size) + int(pw2.size))
                      + 4 * (int(b1s.size) + int(b2s.size) + int(gms.size) + int(bts.size)
                             + int(pb1.size) + int(pb2.size) + Gpad)
                      + Gpad * Epad * 4)

    y_pad = pl.pallas_call(
        kernel,
        out_shape=jax.ShapeDtypeStruct((Gpad, Epad), jnp.float32),
        grid=grid,
        in_specs=in_specs,
        out_specs=out_spec,
        scratch_shapes=scratch_shapes,
        compiler_params=pltpu.CompilerParams(
            # both axes carry dependencies (layer ordering; BN/pool accumulation)
            dimension_semantics=("arbitrary", "arbitrary"),
            vmem_limit_bytes=_VMEM_LIMIT_BYTES,
        ),
        cost_estimate=pl.CostEstimate(
            flops=int(flops),
            transcendentals=int(num_layers * Hpad),
            bytes_accessed=int(bytes_accessed)),
    )(adj, x_pad, mask, pool, counts,
      w1s, b1s, w2s, b2s, gms, bts, pw1, pb1, pw2, pb2)

    return y_pad[:num_graphs, :E]


# --------------------------------------------------------------------------
# Pure-JAX reference that mirrors the kernel's numerics (bf16 matmul inputs,
# f32 accumulation) -- validates the padding / pooling / BN / remap plumbing.
# --------------------------------------------------------------------------
def reference_forward(params, x, edge_index, batch, num_graphs):
    bf = jnp.bfloat16
    src, dst = edge_index[0], edge_index[1]
    n = x.shape[0]
    h = x.astype(bf)
    cnt = (jnp.zeros((num_graphs, 1), jnp.float32)
           .at[batch].add(jnp.ones((n, 1), jnp.float32)))
    pooled = []
    for lp in params["encoder"]:
        hf = h.astype(jnp.float32)
        agg = hf + jnp.zeros_like(hf).at[dst].add(hf[src])
        z = jnp.dot(agg.astype(bf), lp["w1"].astype(bf),
                    preferred_element_type=jnp.float32) + lp["b1"]
        z = jnp.maximum(z, 0.0)
        z = jnp.dot(z.astype(bf), lp["w2"].astype(bf),
                    preferred_element_type=jnp.float32) + lp["b2"]
        z = jnp.maximum(z, 0.0)
        mean = jnp.mean(z, axis=0, keepdims=True)
        var = jnp.maximum(jnp.mean(z * z, axis=0, keepdims=True) - mean * mean, 0.0)
        a = lp["gamma"] * lax.rsqrt(var + BN_EPS)
        b = lp["beta"] - mean * a
        zq = z.astype(bf).astype(jnp.float32)
        pz = jnp.zeros((num_graphs, z.shape[1]), jnp.float32).at[batch].add(zq)
        pooled.append(pz * a + cnt * b)
        h = (z * a + b).astype(bf)
    y = jnp.concatenate(pooled, axis=1)
    ph = params["proj_head"]
    y = jnp.dot(y.astype(bf), ph["w1"].astype(bf),
                preferred_element_type=jnp.float32) + ph["b1"]
    y = jnp.maximum(y, 0.0)
    return jnp.dot(y.astype(bf), ph["w2"].astype(bf),
                   preferred_element_type=jnp.float32) + ph["b2"]


# --------------------------------------------------------------------------
# Example run
# --------------------------------------------------------------------------
if __name__ == "__main__":
    num_features = 16
    hidden_dim = 32
    num_gc_layers = 3
    num_nodes = 16
    num_graphs = 2
    num_edges = 40

    key = jax.random.PRNGKey(0)
    key, kx, ke, kp = jax.random.split(key, 4)

    x = jax.random.normal(kx, (num_nodes, num_features), jnp.float32)
    edge_index = jax.random.randint(ke, (2, num_edges), 0, num_nodes, jnp.int32)
    batch = jnp.concatenate([
        jnp.zeros((num_nodes // 2,), jnp.int32),
        jnp.ones((num_nodes - num_nodes // 2,), jnp.int32),
    ])

    params = init_params(kp, num_features, hidden_dim, num_gc_layers)

    y = simclr_graph_cl_forward(params, x, edge_index, batch, num_graphs)
    jax.block_until_ready(y)

    assert y.shape == (num_graphs, hidden_dim * num_gc_layers)
    assert jnp.all(jnp.isfinite(y))

    y_ref = reference_forward(params, x, edge_index, batch, num_graphs)
    rel_err = float(jnp.linalg.norm(y - y_ref) / (jnp.linalg.norm(y_ref) + 1e-12))
    assert rel_err < 5e-2, f"relative error vs reference too large: {rel_err}"

    print("KERNEL_OK")
</pallas_src>

<mosaic_0001>
module attributes {stable_mosaic.version = 11 : i64} {
  func.func @kernel(%arg0: i32, %arg1: i32, %arg2: memref<128x128xbf16, #tpu.memory_space<vmem>>, %arg3: memref<128x128xbf16, #tpu.memory_space<vmem>>, %arg4: memref<128x1xf32, #tpu.memory_space<vmem>>, %arg5: memref<8x128xbf16, #tpu.memory_space<vmem>>, %arg6: memref<8x1xf32, #tpu.memory_space<vmem>>, %arg7: memref<1x128x128xbf16, #tpu.memory_space<vmem>>, %arg8: memref<1x1x128xf32, #tpu.memory_space<vmem>>, %arg9: memref<1x128x128xbf16, #tpu.memory_space<vmem>>, %arg10: memref<1x1x128xf32, #tpu.memory_space<vmem>>, %arg11: memref<1x1x128xf32, #tpu.memory_space<vmem>>, %arg12: memref<1x1x128xf32, #tpu.memory_space<vmem>>, %arg13: memref<384x128xbf16, #tpu.memory_space<vmem>>, %arg14: memref<1x128xf32, #tpu.memory_space<vmem>>, %arg15: memref<128x128xbf16, #tpu.memory_space<vmem>>, %arg16: memref<1x128xf32, #tpu.memory_space<vmem>>, %arg17: memref<8x128xf32, #tpu.memory_space<vmem>>, %arg18: memref<128x128xbf16, #tpu.memory_space<vmem>>, %arg19: memref<128x128xf32, #tpu.memory_space<vmem>>, %arg20: memref<2x128xf32, #tpu.memory_space<vmem>>, %arg21: memref<3x8x128xf32, #tpu.memory_space<vmem>>) attributes {dimension_semantics = [#tpu.dimension_semantics<arbitrary>, #tpu.dimension_semantics<arbitrary>], iteration_bounds = array<i64: 3, 1>, scalar_prefetch = 0 : i64, scratch_operands = 4 : i64, tpu.core_type = #tpu.core_type<tc>, window_params = [{transform_indices = @transform_0, window_bounds = array<i64: 128, 128>}, {pipeline_mode = #tpu.pipeline_mode<synchronous>, transform_indices = @transform_1, window_bounds = array<i64: 128, 128>}, {transform_indices = @transform_2, window_bounds = array<i64: 128, 1>}, {transform_indices = @transform_3, window_bounds = array<i64: 8, 128>}, {pipeline_mode = #tpu.pipeline_mode<synchronous>, transform_indices = @transform_4, window_bounds = array<i64: 8, 1>}, {transform_indices = @transform_5, window_bounds = array<i64: 1, 128, 128>}, {transform_indices = @transform_6, window_bounds = array<i64: 1, 1, 128>}, {transform_indices = @transform_7, window_bounds = array<i64: 1, 128, 128>}, {transform_indices = @transform_8, window_bounds = array<i64: 1, 1, 128>}, {transform_indices = @transform_9, window_bounds = array<i64: 1, 1, 128>}, {transform_indices = @transform_10, window_bounds = array<i64: 1, 1, 128>}, {pipeline_mode = #tpu.pipeline_mode<synchronous>, transform_indices = @transform_11, window_bounds = array<i64: 384, 128>}, {pipeline_mode = #tpu.pipeline_mode<synchronous>, transform_indices = @transform_12, window_bounds = array<i64: 1, 128>}, {pipeline_mode = #tpu.pipeline_mode<synchronous>, transform_indices = @transform_13, window_bounds = array<i64: 128, 128>}, {pipeline_mode = #tpu.pipeline_mode<synchronous>, transform_indices = @transform_14, window_bounds = array<i64: 1, 128>}, {pipeline_mode = #tpu.pipeline_mode<synchronous>, transform_indices = @transform_15, window_bounds = array<i64: 8, 128>}]} {
    %c0_i32 = arith.constant 0 : i32
    %0 = arith.cmpi eq, %arg0, %c0_i32 : i32
    %c0_i32_0 = arith.constant 0 : i32
    %1 = arith.cmpi eq, %arg1, %c0_i32_0 : i32
    %2 = arith.andi %0, %1 : i1
    %3 = arith.extui %2 : i1 to i32
    %c0_i32_1 = arith.constant 0 : i32
    %4 = arith.cmpi ne, %3, %c0_i32_1 : i32
    scf.if %4 {
      %c0_44 = arith.constant 0 : index
      %c0_45 = arith.constant 0 : index
      %63 = vector.load %arg3[%c0_44, %c0_45] : memref<128x128xbf16, #tpu.memory_space<vmem>>, vector<128x128xbf16>
      %c0_46 = arith.constant 0 : index
      %c0_47 = arith.constant 0 : index
      %64 = vector.load %arg18[%c0_46, %c0_47] : memref<128x128xbf16, #tpu.memory_space<vmem>>, vector<128x128xbf16>
      tpu.vector_store %arg18[%c0_46, %c0_47], %63 {strides = array<i32>} : memref<128x128xbf16, #tpu.memory_space<vmem>>, vector<128x128xbf16>,
    } else {
    }
    %c0_i32_2 = arith.constant 0 : i32
    %5 = arith.cmpi eq, %arg1, %c0_i32_2 : i32
    %6 = arith.extui %5 : i1 to i32
    %c0_i32_3 = arith.constant 0 : i32
    %7 = arith.cmpi ne, %6, %c0_i32_3 : i32
    scf.if %7 {
      %cst_44 = arith.constant 0.000000e+00 : f32
      %63 = vector.broadcast %cst_44 : f32 to vector<2x128xf32>
      %c0_45 = arith.constant 0 : index
      %c0_46 = arith.constant 0 : index
      %64 = vector.load %arg20[%c0_45, %c0_46] : memref<2x128xf32, #tpu.memory_space<vmem>>, vector<2x128xf32>
      tpu.vector_store %arg20[%c0_45, %c0_46], %63 {strides = array<i32>} : memref<2x128xf32, #tpu.memory_space<vmem>>, vector<2x128xf32>,
      %cst_47 = arith.constant 0.000000e+00 : f32
      %65 = vector.broadcast %cst_47 : f32 to vector<8x128xf32>
      %66 = arith.index_cast %arg0 : i32 to index
      %c0_48 = arith.constant 0 : index
      %c0_49 = arith.constant 0 : index
      %67 = vector.load %arg21[%66, %c0_48, %c0_49] : memref<3x8x128xf32, #tpu.memory_space<vmem>>, vector<1x8x128xf32>
      %68 = vector.shape_cast %67 : vector<1x8x128xf32> to vector<8x128xf32>
      %69 = vector.shape_cast %65 : vector<8x128xf32> to vector<1x8x128xf32>
      tpu.vector_store %arg21[%66, %c0_48, %c0_49], %69 {strides = array<i32>} : memref<3x8x128xf32, #tpu.memory_space<vmem>>, vector<1x8x128xf32>,
    } else {
    }
    %c0 = arith.constant 0 : index
    %c0_4 = arith.constant 0 : index
    %8 = vector.load %arg2[%c0, %c0_4] : memref<128x128xbf16, #tpu.memory_space<vmem>>, vector<128x128xbf16>
    %c0_5 = arith.constant 0 : index
    %c0_6 = arith.constant 0 : index
    %9 = vector.load %arg18[%c0_5, %c0_6] : memref<128x128xbf16, #tpu.memory_space<vmem>>, vector<128x128xbf16>
    %cst = arith.constant dense<0.000000e+00> : vector<128x128xf32>
    %10 = tpu.matmul %8, %9, %cst {dimension_numbers = #tpu.dot_dimension_numbers<[1], [0], [0], [1], [0, 0, 1, 1], [], []>} : vector<128x128xbf16>, vector<128x128xbf16>, vector<128x128xf32> -> vector<128x128xf32>
    %11 = arith.truncf %10 : vector<128x128xf32> to vector<128x128xbf16>
    %c0_7 = arith.constant 0 : index
    %c0_8 = arith.constant 0 : index
    %c0_9 = arith.constant 0 : index
    %12 = vector.load %arg7[%c0_7, %c0_8, %c0_9] : memref<1x128x128xbf16, #tpu.memory_space<vmem>>, vector<1x128x128xbf16>
    %13 = vector.shape_cast %12 : vector<1x128x128xbf16> to vector<128x128xbf16>
    %cst_10 = arith.constant dense<0.000000e+00> : vector<128x128xf32>
    %14 = tpu.matmul %11, %13, %cst_10 {dimension_numbers = #tpu.dot_dimension_numbers<[1], [0], [0], [1], [0, 0, 1, 1], [], []>} : vector<128x128xbf16>, vector<128x128xbf16>, vector<128x128xf32> -> vector<128x128xf32>
    %c0_11 = arith.constant 0 : index
    %c0_12 = arith.constant 0 : index
    %c0_13 = arith.constant 0 : index
    %15 = vector.load %arg8[%c0_11, %c0_12, %c0_13] : memref<1x1x128xf32, #tpu.memory_space<vmem>>, vector<1x1x128xf32>
    %16 = vector.shape_cast %15 : vector<1x1x128xf32> to vector<1x128xf32>
    %17 = vector.broadcast %16 : vector<1x128xf32> to vector<128x128xf32>
    %18 = arith.addf %14, %17 : vector<128x128xf32>
    %cst_14 = arith.constant 0.000000e+00 : f32
    %19 = vector.broadcast %cst_14 : f32 to vector<128x128xf32>
    %20 = arith.maximumf %18, %19 : vector<128x128xf32>
    %21 = arith.truncf %20 : vector<128x128xf32> to vector<128x128xbf16>
    %c0_15 = arith.constant 0 : index
    %c0_16 = arith.constant 0 : index
    %c0_17 = arith.constant 0 : index
    %22 = vector.load %arg9[%c0_15, %c0_16, %c0_17] : memref<1x128x128xbf16, #tpu.memory_space<vmem>>, vector<1x128x128xbf16>
    %23 = vector.shape_cast %22 : vector<1x128x128xbf16> to vector<128x128xbf16>
    %cst_18 = arith.constant dense<0.000000e+00> : vector<128x128xf32>
    %24 = tpu.matmul %21, %23, %cst_18 {dimension_numbers = #tpu.dot_dimension_numbers<[1], [0], [0], [1], [0, 0, 1, 1], [], []>} : vector<128x128xbf16>, vector<128x128xbf16>, vector<128x128xf32> -> vector<128x128xf32>
    %c0_19 = arith.constant 0 : index
    %c0_20 = arith.constant 0 : index
    %c0_21 = arith.constant 0 : index
    %25 = vector.load %arg10[%c0_19, %c0_20, %c0_21] : memref<1x1x128xf32, #tpu.memory_space<vmem>>, vector<1x1x128xf32>
    %26 = vector.shape_cast %25 : vector<1x1x128xf32> to vector<1x128xf32>
    %27 = vector.broadcast %26 : vector<1x128xf32> to vector<128x128xf32>
    %28 = arith.addf %24, %27 : vector<128x128xf32>
    %cst_22 = arith.constant 0.000000e+00 : f32
    %29 = vector.broadcast %cst_22 : f32 to vector<128x128xf32>
    %30 = arith.maximumf %28, %29 : vector<128x128xf32>
    %c0_23 = arith.constant 0 : index
    %c0_24 = arith.constant 0 : index
    %31 = vector.load %arg4[%c0_23, %c0_24] : memref<128x1xf32, #tpu.memory_space<vmem>>, vector<128x1xf32>
    %32 = vector.broadcast %31 : vector<128x1xf32> to vector<128x128xf32>
    %33 = arith.mulf %30, %32 : vector<128x128xf32>
    %c0_25 = arith.constant 0 : index
    %c0_26 = arith.constant 0 : index
    %34 = vector.load %arg20[%c0_25, %c0_26] : memref<2x128xf32, #tpu.memory_space<vmem>>, vector<1x128xf32>
    %cst_27 = arith.constant dense<0.000000e+00> : vector<128xf32>
    %35 = vector.multi_reduction <add>, %33, %cst_27 [0] : vector<128x128xf32> to vector<128xf32>
    %36 = vector.shape_cast %35 : vector<128xf32> to vector<1x128xf32>
    %37 = arith.addf %34, %36 : vector<1x128xf32>
    %c0_28 = arith.constant 0 : index
    %c0_29 = arith.constant 0 : index
    %38 = vector.load %arg20[%c0_28, %c0_29] : memref<2x128xf32, #tpu.memory_space<vmem>>, vector<1x128xf32>
    tpu.vector_store %arg20[%c0_28, %c0_29], %37 {strides = array<i32>} : memref<2x128xf32, #tpu.memory_space<vmem>>, vector<1x128xf32>,
    %c1 = arith.constant 1 : index
    %c0_30 = arith.constant 0 : index
    %39 = vector.load %arg20[%c1, %c0_30] : memref<2x128xf32, #tpu.memory_space<vmem>>, vector<1x128xf32>
    %40 = arith.mulf %33, %30 : vector<128x128xf32>
    %cst_31 = arith.constant dense<0.000000e+00> : vector<128xf32>
    %41 = vector.multi_reduction <add>, %40, %cst_31 [0] : vector<128x128xf32> to vector<128xf32>
    %42 = vector.shape_cast %41 : vector<128xf32> to vector<1x128xf32>
    %43 = arith.addf %39, %42 : vector<1x128xf32>
    %c1_32 = arith.constant 1 : index
    %c0_33 = arith.constant 0 : index
    %44 = vector.load %arg20[%c1_32, %c0_33] : memref<2x128xf32, #tpu.memory_space<vmem>>, vector<1x128xf32>
    tpu.vector_store %arg20[%c1_32, %c0_33], %43 {strides = array<i32>} : memref<2x128xf32, #tpu.memory_space<vmem>>, vector<1x128xf32>,
    %45 = arith.truncf %30 : vector<128x128xf32> to vector<128x128xbf16>
    %46 = arith.index_cast %arg0 : i32 to index
    %c0_34 = arith.constant 0 : index
    %c0_35 = arith.constant 0 : index
    %47 = vector.load %arg21[%46, %c0_34, %c0_35] : memref<3x8x128xf32, #tpu.memory_space<vmem>>, vector<1x8x128xf32>
    %48 = vector.shape_cast %47 : vector<1x8x128xf32> to vector<8x128xf32>
    %c0_36 = arith.constant 0 : index
    %c0_37 = arith.constant 0 : index
    %49 = vector.load %arg5[%c0_36, %c0_37] : memref<8x128xbf16, #tpu.memory_space<vmem>>, vector<8x128xbf16>
    %cst_38 = arith.constant dense<0.000000e+00> : vector<8x128xf32>
    %50 = tpu.matmul %49, %45, %cst_38 {dimension_numbers = #tpu.dot_dimension_numbers<[1], [0], [0], [1], [0, 0, 1, 1], [], []>} : vector<8x128xbf16>, vector<128x128xbf16>, vector<8x128xf32> -> vector<8x128xf32>
    %51 = arith.addf %48, %50 : vector<8x128xf32>
    %52 = arith.index_cast %arg0 : i32 to index
    %c0_39 = arith.constant 0 : index
    %c0_40 = arith.constant 0 : index
    %53 = vector.load %arg21[%52, %c0_39, %c0_40] : memref<3x8x128xf32, #tpu.memory_space<vmem>>, vector<1x8x128xf32>
    %54 = vector.shape_cast %53 : vector<1x8x128xf32> to vector<8x128xf32>
    %55 = vector.shape_cast %51 : vector<8x128xf32> to vector<1x8x128xf32>
    tpu.vector_store %arg21[%52, %c0_39, %c0_40], %55 {strides = array<i32>} : memref<3x8x128xf32, #tpu.memory_space<vmem>>, vector<1x8x128xf32>,
    %c128_i32 = arith.constant 128 : i32
    %56 = arith.muli %arg1, %c128_i32 : i32
    %57 = tpu.assume_multiple %56, 128 : i32
    %58 = arith.index_cast %57 : i32 to index
    %c0_41 = arith.constant 0 : index
    %59 = vector.load %arg19[%58, %c0_41] : memref<128x128xf32, #tpu.memory_space<vmem>>, vector<128x128xf32>
    tpu.vector_store %arg19[%58, %c0_41], %30 {strides = array<i32>} : memref<128x128xf32, #tpu.memory_space<vmem>>, vector<128x128xf32>,
    %c0_i32_42 = arith.constant 0 : i32
    %60 = arith.cmpi eq, %arg1, %c0_i32_42 : i32
    %61 = arith.extui %60 : i1 to i32
    %c0_i32_43 = arith.constant 0 : i32
    %62 = arith.cmpi ne, %61, %c0_i32_43 : i32
    scf.if %62 {
      %c0_44 = arith.constant 0 : index
      %c0_45 = arith.constant 0 : index
      %63 = vector.load %arg20[%c0_44, %c0_45] : memref<2x128xf32, #tpu.memory_space<vmem>>, vector<1x128xf32>
      %cst_46 = arith.constant 6.250000e-02 : f32
      %64 = vector.broadcast %cst_46 : f32 to vector<1x128xf32>
      %65 = arith.mulf %63, %64 : vector<1x128xf32>
      %c1_47 = arith.constant 1 : index
      %c0_48 = arith.constant 0 : index
      %66 = vector.load %arg20[%c1_47, %c0_48] : memref<2x128xf32, #tpu.memory_space<vmem>>, vector<1x128xf32>
      %cst_49 = arith.constant 6.250000e-02 : f32
      %67 = vector.broadcast %cst_49 : f32 to vector<1x128xf32>
      %68 = arith.mulf %66, %67 : vector<1x128xf32>
      %69 = arith.mulf %65, %65 : vector<1x128xf32>
      %70 = arith.subf %68, %69 : vector<1x128xf32>
      %cst_50 = arith.constant 0.000000e+00 : f32
      %71 = vector.broadcast %cst_50 : f32 to vector<1x128xf32>
      %72 = arith.maximumf %70, %71 : vector<1x128xf32>
      %c0_51 = arith.constant 0 : index
      %c0_52 = arith.constant 0 : index
      %c0_53 = arith.constant 0 : index
      %73 = vector.load %arg11[%c0_51, %c0_52, %c0_53] : memref<1x1x128xf32, #tpu.memory_space<vmem>>, vector<1x1x128xf32>
      %74 = vector.shape_cast %73 : vector<1x1x128xf32> to vector<1x128xf32>
      %cst_54 = arith.constant 9.99999974E-6 : f32
      %75 = vector.broadcast %cst_54 : f32 to vector<1x128xf32>
      %76 = arith.addf %72, %75 : vector<1x128xf32>
      %77 = math.rsqrt %76 : vector<1x128xf32>
      %78 = arith.mulf %74, %77 : vector<1x128xf32>
      %c0_55 = arith.constant 0 : index
      %c0_56 = arith.constant 0 : index
      %c0_57 = arith.constant 0 : index
      %79 = vector.load %arg12[%c0_55, %c0_56, %c0_57] : memref<1x1x128xf32, #tpu.memory_space<vmem>>, vector<1x1x128xf32>
      %80 = vector.shape_cast %79 : vector<1x1x128xf32> to vector<1x128xf32>
      %81 = arith.mulf %65, %78 : vector<1x128xf32>
      %82 = arith.subf %80, %81 : vector<1x128xf32>
      %83 = arith.index_cast %arg0 : i32 to index
      %c0_58 = arith.constant 0 : index
      %c0_59 = arith.constant 0 : index
      %84 = vector.load %arg21[%83, %c0_58, %c0_59] : memref<3x8x128xf32, #tpu.memory_space<vmem>>, vector<1x8x128xf32>
      %85 = vector.shape_cast %84 : vector<1x8x128xf32> to vector<8x128xf32>
      %86 = vector.broadcast %78 : vector<1x128xf32> to vector<8x128xf32>
      %87 = arith.mulf %85, %86 : vector<8x128xf32>
      %c0_60 = arith.constant 0 : index
      %c0_61 = arith.constant 0 : index
      %88 = vector.load %arg6[%c0_60, %c0_61] : memref<8x1xf32, #tpu.memory_space<vmem>>, vector<8x1xf32>
      %89 = vector.broadcast %88 : vector<8x1xf32> to vector<8x128xf32>
      %90 = vector.broadcast %82 : vector<1x128xf32> to vector<8x128xf32>
      %91 = arith.mulf %89, %90 : vector<8x128xf32>
      %92 = arith.addf %87, %91 : vector<8x128xf32>
      %93 = arith.index_cast %arg0 : i32 to index
      %c0_62 = arith.constant 0 : index
      %c0_63 = arith.constant 0 : index
      %94 = vector.load %arg21[%93, %c0_62, %c0_63] : memref<3x8x128xf32, #tpu.memory_space<vmem>>, vector<1x8x128xf32>
      %95 = vector.shape_cast %94 : vector<1x8x128xf32> to vector<8x128xf32>
      %96 = vector.shape_cast %92 : vector<8x128xf32> to vector<1x8x128xf32>
      tpu.vector_store %arg21[%93, %c0_62, %c0_63], %96 {strides = array<i32>} : memref<3x8x128xf32, #tpu.memory_space<vmem>>, vector<1x8x128xf32>,
      %c2_i32 = arith.constant 2 : i32
      %97 = arith.cmpi slt, %arg0, %c2_i32 : i32
      %98 = arith.extui %97 : i1 to i32
      %c0_i32_64 = arith.constant 0 : i32
      %99 = arith.cmpi ne, %98, %c0_i32_64 : i32
      scf.if %99 {
        %c0_67 = arith.constant 0 : index
        %c0_68 = arith.constant 0 : index
        %103 = vector.load %arg19[%c0_67, %c0_68] : memref<128x128xf32, #tpu.memory_space<vmem>>, vector<128x128xf32>
        %104 = vector.broadcast %78 : vector<1x128xf32> to vector<128x128xf32>
        %105 = arith.mulf %103, %104 : vector<128x128xf32>
        %106 = vector.broadcast %82 : vector<1x128xf32> to vector<128x128xf32>
        %107 = arith.addf %105, %106 : vector<128x128xf32>
        %108 = arith.truncf %107 : vector<128x128xf32> to vector<128x128xbf16>
        %c0_69 = arith.constant 0 : index
        %c0_70 = arith.constant 0 : index
        %109 = vector.load %arg18[%c0_69, %c0_70] : memref<128x128xbf16, #tpu.memory_space<vmem>>, vector<128x128xbf16>
        tpu.vector_store %arg18[%c0_69, %c0_70], %108 {strides = array<i32>} : memref<128x128xbf16, #tpu.memory_space<vmem>>, vector<128x128xbf16>,
      } else {
      }
      %c2_i32_65 = arith.constant 2 : i32
      %100 = arith.cmpi eq, %arg0, %c2_i32_65 : i32
      %101 = arith.extui %100 : i1 to i32
      %c0_i32_66 = arith.constant 0 : i32
      %102 = arith.cmpi ne, %101, %c0_i32_66 : i32
      scf.if %102 {
        %c0_67 = arith.constant 0 : index
        %c0_68 = arith.constant 0 : index
        %c0_69 = arith.constant 0 : index
        %103 = vector.load %arg21[%c0_67, %c0_68, %c0_69] : memref<3x8x128xf32, #tpu.memory_space<vmem>>, vector<1x8x128xf32>
        %104 = vector.shape_cast %103 : vector<1x8x128xf32> to vector<8x128xf32>
        %c1_70 = arith.constant 1 : index
        %c0_71 = arith.constant 0 : index
        %c0_72 = arith.constant 0 : index
        %105 = vector.load %arg21[%c1_70, %c0_71, %c0_72] : memref<3x8x128xf32, #tpu.memory_space<vmem>>, vector<1x8x128xf32>
        %106 = vector.shape_cast %105 : vector<1x8x128xf32> to vector<8x128xf32>
        %c2 = arith.constant 2 : index
        %c0_73 = arith.constant 0 : index
        %c0_74 = arith.constant 0 : index
        %107 = vector.load %arg21[%c2, %c0_73, %c0_74] : memref<3x8x128xf32, #tpu.memory_space<vmem>>, vector<1x8x128xf32>
        %108 = vector.shape_cast %107 : vector<1x8x128xf32> to vector<8x128xf32>
        %109 = tpu.concatenate %104, %106, %108 in 1 : vector<8x128xf32>, vector<8x128xf32>, vector<8x128xf32> -> vector<8x384xf32>
        %110 = arith.truncf %109 : vector<8x384xf32> to vector<8x384xbf16>
        %c0_75 = arith.constant 0 : index
        %c0_76 = arith.constant 0 : index
        %111 = vector.load %arg13[%c0_75, %c0_76] : memref<384x128xbf16, #tpu.memory_space<vmem>>, vector<384x128xbf16>
        %cst_77 = arith.constant dense<0.000000e+00> : vector<8x128xf32>
        %112 = tpu.matmul %110, %111, %cst_77 {dimension_numbers = #tpu.dot_dimension_numbers<[1], [0], [0], [1], [0, 0, 1, 1], [], []>} : vector<8x384xbf16>, vector<384x128xbf16>, vector<8x128xf32> -> vector<8x128xf32>
        %c0_78 = arith.constant 0 : index
        %c0_79 = arith.constant 0 : index
        %113 = vector.load %arg14[%c0_78, %c0_79] : memref<1x128xf32, #tpu.memory_space<vmem>>, vector<1x128xf32>
        %114 = vector.broadcast %113 : vector<1x128xf32> to vector<8x128xf32>
        %115 = arith.addf %112, %114 : vector<8x128xf32>
        %cst_80 = arith.constant 0.000000e+00 : f32
        %116 = vector.broadcast %cst_80 : f32 to vector<8x128xf32>
        %117 = arith.maximumf %115, %116 : vector<8x128xf32>
        %118 = arith.truncf %117 : vector<8x128xf32> to vector<8x128xbf16>
        %c0_81 = arith.constant 0 : index
        %c0_82 = arith.constant 0 : index
        %119 = vector.load %arg15[%c0_81, %c0_82] : memref<128x128xbf16, #tpu.memory_space<vmem>>, vector<128x128xbf16>
        %cst_83 = arith.constant dense<0.000000e+00> : vector<8x128xf32>
        %120 = tpu.matmul %118, %119, %cst_83 {dimension_numbers = #tpu.dot_dimension_numbers<[1], [0], [0], [1], [0, 0, 1, 1], [], []>} : vector<8x128xbf16>, vector<128x128xbf16>, vector<8x128xf32> -> vector<8x128xf32>
        %c0_84 = arith.constant 0 : index
        %c0_85 = arith.constant 0 : index
        %121 = vector.load %arg16[%c0_84, %c0_85] : memref<1x128xf32, #tpu.memory_space<vmem>>, vector<1x128xf32>
        %122 = vector.broadcast %121 : vector<1x128xf32> to vector<8x128xf32>
        %123 = arith.addf %120, %122 : vector<8x128xf32>
        %c0_86 = arith.constant 0 : index
        %c0_87 = arith.constant 0 : index
        %124 = vector.load %arg17[%c0_86, %c0_87] : memref<8x128xf32, #tpu.memory_space<vmem>>, vector<8x128xf32>
        tpu.vector_store %arg17[%c0_86, %c0_87], %123 {strides = array<i32>} : memref<8x128xf32, #tpu.memory_space<vmem>>, vector<8x128xf32>,
      } else {
      }
    } else {
    }
    return
  }
  func.func @transform_0(%arg0: i32, %arg1: i32) -> (i32, i32) {
    %c0_i32 = arith.constant 0 : i32
    %c0_i32_0 = arith.constant 0 : i32
    return %arg1, %c0_i32 : i32, i32
  }
  func.func @transform_1(%arg0: i32, %arg1: i32) -> (i32, i32) {
    %c0_i32 = arith.constant 0 : i32
    %c0_i32_0 = arith.constant 0 : i32
    %c0_i32_1 = arith.constant 0 : i32
    return %c0_i32, %c0_i32_0 : i32, i32
  }
  func.func @transform_2(%arg0: i32, %arg1: i32) -> (i32, i32) {
    %c0_i32 = arith.constant 0 : i32
    %c0_i32_0 = arith.constant 0 : i32
    return %arg1, %c0_i32 : i32, i32
  }
  func.func @transform_3(%arg0: i32, %arg1: i32) -> (i32, i32) {
    %c0_i32 = arith.constant 0 : i32
    %c0_i32_0 = arith.constant 0 : i32
    return %c0_i32, %arg1 : i32, i32
  }
  func.func @transform_4(%arg0: i32, %arg1: i32) -> (i32, i32) {
    %c0_i32 = arith.constant 0 : i32
    %c0_i32_0 = arith.constant 0 : i32
    %c0_i32_1 = arith.constant 0 : i32
    return %c0_i32, %c0_i32_0 : i32, i32
  }
  func.func @transform_5(%arg0: i32, %arg1: i32) -> (i32, i32, i32) {
    %c0_i32 = arith.constant 0 : i32
    %c0_i32_0 = arith.constant 0 : i32
    %c0_i32_1 = arith.constant 0 : i32
    return %arg0, %c0_i32, %c0_i32_0 : i32, i32, i32
  }
  func.func @transform_6(%arg0: i32, %arg1: i32) -> (i32, i32, i32) {
    %c0_i32 = arith.constant 0 : i32
    %c0_i32_0 = arith.constant 0 : i32
    %c0_i32_1 = arith.constant 0 : i32
    return %arg0, %c0_i32, %c0_i32_0 : i32, i32, i32
  }
  func.func @transform_7(%arg0: i32, %arg1: i32) -> (i32, i32, i32) {
    %c0_i32 = arith.constant 0 : i32
    %c0_i32_0 = arith.constant 0 : i32
    %c0_i32_1 = arith.constant 0 : i32
    return %arg0, %c0_i32, %c0_i32_0 : i32, i32, i32
  }
  func.func @transform_8(%arg0: i32, %arg1: i32) -> (i32, i32, i32) {
    %c0_i32 = arith.constant 0 : i32
    %c0_i32_0 = arith.constant 0 : i32
    %c0_i32_1 = arith.constant 0 : i32
    return %arg0, %c0_i32, %c0_i32_0 : i32, i32, i32
  }
  func.func @transform_9(%arg0: i32, %arg1: i32) -> (i32, i32, i32) {
    %c0_i32 = arith.constant 0 : i32
    %c0_i32_0 = arith.constant 0 : i32
    %c0_i32_1 = arith.constant 0 : i32
    return %arg0, %c0_i32, %c0_i32_0 : i32, i32, i32
  }
  func.func @transform_10(%arg0: i32, %arg1: i32) -> (i32, i32, i32) {
    %c0_i32 = arith.constant 0 : i32
    %c0_i32_0 = arith.constant 0 : i32
    %c0_i32_1 = arith.constant 0 : i32
    return %arg0, %c0_i32, %c0_i32_0 : i32, i32, i32
  }
  func.func @transform_11(%arg0: i32, %arg1: i32) -> (i32, i32) {
    %c0_i32 = arith.constant 0 : i32
    %c0_i32_0 = arith.constant 0 : i32
    %c0_i32_1 = arith.constant 0 : i32
    return %c0_i32, %c0_i32_0 : i32, i32
  }
  func.func @transform_12(%arg0: i32, %arg1: i32) -> (i32, i32) {
    %c0_i32 = arith.constant 0 : i32
    %c0_i32_0 = arith.constant 0 : i32
    %c0_i32_1 = arith.constant 0 : i32
    return %c0_i32, %c0_i32_0 : i32, i32
  }
  func.func @transform_13(%arg0: i32, %arg1: i32) -> (i32, i32) {
    %c0_i32 = arith.constant 0 : i32
    %c0_i32_0 = arith.constant 0 : i32
    %c0_i32_1 = arith.constant 0 : i32
    return %c0_i32, %c0_i32_0 : i32, i32
  }
  func.func @transform_14(%arg0: i32, %arg1: i32) -> (i32, i32) {
    %c0_i32 = arith.constant 0 : i32
    %c0_i32_0 = arith.constant 0 : i32
    %c0_i32_1 = arith.constant 0 : i32
    return %c0_i32, %c0_i32_0 : i32, i32
  }
  func.func @transform_15(%arg0: i32, %arg1: i32) -> (i32, i32) {
    %c0_i32 = arith.constant 0 : i32
    %c0_i32_0 = arith.constant 0 : i32
    %c0_i32_1 = arith.constant 0 : i32
    return %c0_i32, %c0_i32_0 : i32, i32
  }
}

</mosaic_0001>

<llo_original>
// kernel: simclr_graph_cl_forward.1
$region0: #{simclr_graph_cl_forward.1}
  #allocation0 [shape = 'u32[]', space=smem, size = 0x4, offset = 0x4, fixed_abs, tag = 'smem constant byte address 0x4 - core index']
  #allocation1 [shape = 'u32[144,128]{1,0:T(1,128)}', space=vmem, size = 0x12000, scoped, tag = 'internal scratch']
  #allocation2 [shape = 'bf16[128,128]{1,0:T(16,128)(2,1)}', space=vmem, size = 0x8000, scoped, tag = 'scratch operand']
  #allocation3 [shape = 'f32[128,128]{1,0:T(8,128)}', space=vmem, size = 0x10000, scoped, tag = 'scratch operand']
  #allocation4 [shape = 'f32[2,128]{1,0:T(2,128)}', space=vmem, size = 0x400, scoped, tag = 'scratch operand']
  #allocation5 [shape = 'f32[3,8,128]{2,1,0:T(8,128)}', space=vmem, size = 0x3000, scoped, tag = 'scratch operand']
  %s0 = inlined_call_operand.vmem [shape: bf16[128,128], index: 0, kind: input, shape index: {}]
  %s1 = inlined_call_operand.vmem [shape: bf16[128,128], index: 1, kind: input, shape index: {}]
  %s2 = inlined_call_operand.vmem [shape: f32[128,1], index: 2, kind: input, shape index: {}]
  %s3 = inlined_call_operand.vmem [shape: bf16[8,128], index: 3, kind: input, shape index: {}]
  %s4 = inlined_call_operand.vmem [shape: f32[8,1], index: 4, kind: input, shape index: {}]
  %s5 = inlined_call_operand.vmem [shape: bf16[3,128,128], index: 5, kind: input, shape index: {}]
  %s6 = inlined_call_operand.vmem [shape: f32[3,1,128], index: 6, kind: input, shape index: {}]
  %s7 = inlined_call_operand.vmem [shape: bf16[3,128,128], index: 7, kind: input, shape index: {}]
  %s8 = inlined_call_operand.vmem [shape: f32[3,1,128], index: 8, kind: input, shape index: {}]
  %s9 = inlined_call_operand.vmem [shape: f32[3,1,128], index: 9, kind: input, shape index: {}]
  %s10 = inlined_call_operand.vmem [shape: f32[3,1,128], index: 10, kind: input, shape index: {}]
  %s11 = inlined_call_operand.vmem [shape: bf16[384,128], index: 11, kind: input, shape index: {}]
  %s12 = inlined_call_operand.vmem [shape: f32[1,128], index: 12, kind: input, shape index: {}]
  %s13 = inlined_call_operand.vmem [shape: bf16[128,128], index: 13, kind: input, shape index: {}]
  %s14 = inlined_call_operand.vmem [shape: f32[1,128], index: 14, kind: input, shape index: {}]
  %s15 = inlined_call_operand.vmem [shape: f32[8,128], index: 15, kind: output, shape index: {}]
  %s16 = sld [smem:[#allocation0]]
  $region113: #{simclr_graph_cl_forward.1} parent=0
    _
  %s18 = ssub.s32 1, %s16
  %s19 = scalar_select 0, %s18, %s16
  loop: start=0, step=1, limit=5
  $region2: #{simclr_graph_cl_forward.1} parent=0 // loop_pre_header
    _
  $region3: #{simclr_graph_cl_forward.1} parent=0 // loop_header
    %s21 = sphi 0, %s25
    %p22 = scmp.ge.s32.totalorder %s21, 5
    %s28 = sphi 0, %s40
    %s29 = sphi 0, %s36
    %s30 = sphi 0, %s28
    %s31 = sphi 0, %s29
    %s32 = sphi 0, %s30
    %s33 = sphi 0, %s31
    %s43 = sphi 0, %s45
    %s46 = sphi 0, %s43
    %s47 = sphi 0, %s46
    %s63 = sphi 0, %s47
    %s67 = sphi 0, %s67
    %s69 = sphi 0, %s67
    %s70 = sphi 0, %s69
    %s84 = sphi 0, %s70
    %s90 = sphi 0, %s92
    %s93 = sphi 0, %s90
    %s94 = sphi 0, %s93
    %s110 = sphi 0, %s94
    %s116 = sphi 0, %s118
    %s119 = sphi 0, %s116
    %s120 = sphi 0, %s119
    %s136 = sphi 0, %s120
    %s140 = sphi 0, %s140
    %s142 = sphi 0, %s140
    %s143 = sphi 0, %s142
    %s157 = sphi 0, %s143
    %s163 = sphi 0, %s165
    %s166 = sphi 0, %s163
    %s167 = sphi 0, %s166
    %s183 = sphi 0, %s167
    %s189 = sphi 0, %s191
    %s192 = sphi 0, %s189
    %s193 = sphi 0, %s192
    %s209 = sphi 0, %s193
    %s215 = sphi 0, %s217
    %s218 = sphi 0, %s215
    %s219 = sphi 0, %s218
    %s235 = sphi 0, %s219
    %s241 = sphi 0, %s243
    %s244 = sphi 0, %s241
    %s245 = sphi 0, %s244
    %s261 = sphi 0, %s245
    %s267 = sphi 0, %s269
    %s270 = sphi 0, %s267
    %s271 = sphi 0, %s270
    %s287 = sphi 0, %s271
    %s293 = sphi 0, %s295
    %s296 = sphi 0, %s293
    %s297 = sphi 0, %s296
    %s313 = sphi 0, %s297
    %s317 = sphi 0, %s317
    %s319 = sphi 0, %s317
    %s320 = sphi 0, %s319
    %s334 = sphi 0, %s320
    %s338 = sphi 0, %s338
    %s340 = sphi 0, %s338
    %s341 = sphi 0, %s340
    %s355 = sphi 0, %s341
    %s359 = sphi 0, %s359
    %s361 = sphi 0, %s359
    %s362 = sphi 0, %s361
    %s376 = sphi 0, %s362
    %s380 = sphi 0, %s380
    %s382 = sphi 0, %s380
    %s383 = sphi 0, %s382
    %s397 = sphi 0, %s383
    %s401 = sphi 0, %s401
    %s403 = sphi 0, %s401
    %s404 = sphi 0, %s403
    %s418 = sphi 0, %s404
  $region4: #{simclr_graph_cl_forward.1} parent=0 // loop_header_branch
    %24 = sbr.rel (%p22) target = $region8
  $region5: #{simclr_graph_cl_forward.1} parent=0 // loop_body
    %s26 = ssub.s32 %s21, 1
    %s27 = ssub.s32 %s21, 2
    %s34 = sadd.s32 1, %s29
    %p35 = scmp.ge.s32.totalorder %s34, 1
    %s36 = scalar_select %p35, 0, %s34
    %s37 = sadd.s32 1, %s28
    %s38 = scalar_select %p35, %s37, %s28
    %p39 = scmp.ge.s32.totalorder %s38, 3
    %s40 = scalar_select %p39, 0, %s38
    %s41 = ssub.s32 %s29, %s36
    %p42 = scmp.eq.s32.totalorder %s41, 0
    %s44 = sadd.s32 %s43, 1
    %s45 = scalar_select %p42, %s43, %s44
    %p48 = pneg %p42
    %p49 = scmp.eq.s32.totalorder %s21, 2
    %p50 = por %p48, %p49
    %p51 = scmp.ne.s32.totalorder %s43, %s46
    %p52 = scmp.eq.s32.totalorder %s21, 0
    %p53 = por %p51, %p52
    %p54 = scmp.ne.s32.totalorder %s43, %s46
    %p55 = scmp.eq.s32.totalorder %s26, 2
    %p56 = por %p54, %p55
    %p57 = scmp.ne.s32.totalorder %s46, %s47
    %p58 = scmp.eq.s32.totalorder %s26, 0
    %p59 = por %p57, %p58
    %p60 = scmp.ne.s32.totalorder %s46, %s47
    %p61 = scmp.eq.s32.totalorder %s27, 2
    %p62 = por %p60, %p61
    %p64 = scmp.ne.s32.totalorder %s47, %s63
    %p65 = scmp.eq.s32.totalorder %s27, 0
    %p66 = por %p64, %p65
    %s68 = sadd.s32 %s67, 1
    %p71 = scmp.eq.s32.totalorder %s21, 2
    %p72 = scmp.ne.s32.totalorder %s67, %s69
    %p73 = scmp.eq.s32.totalorder %s21, 0
    %p74 = por %p72, %p73
    %p75 = scmp.ne.s32.totalorder %s67, %s69
    %p76 = scmp.eq.s32.totalorder %s26, 2
    %p77 = por %p75, %p76
    %p78 = scmp.ne.s32.totalorder %s69, %s70
    %p79 = scmp.eq.s32.totalorder %s26, 0
    %p80 = por %p78, %p79
    %p81 = scmp.ne.s32.totalorder %s69, %s70
    %p82 = scmp.eq.s32.totalorder %s27, 2
    %p83 = por %p81, %p82
    %p85 = scmp.ne.s32.totalorder %s70, %s84
    %p86 = scmp.eq.s32.totalorder %s27, 0
    %p87 = por %p85, %p86
    %s88 = ssub.s32 %s29, %s36
    %p89 = scmp.eq.s32.totalorder %s88, 0
    %s91 = sadd.s32 %s90, 1
    %s92 = scalar_select %p89, %s90, %s91
    %p95 = pneg %p89
    %p96 = scmp.eq.s32.totalorder %s21, 2
    %p97 = por %p95, %p96
    %p98 = scmp.ne.s32.totalorder %s90, %s93
    %p99 = scmp.eq.s32.totalorder %s21, 0
    %p100 = por %p98, %p99
    %p101 = scmp.ne.s32.totalorder %s90, %s93
    %p102 = scmp.eq.s32.totalorder %s26, 2
    %p103 = por %p101, %p102
    %p104 = scmp.ne.s32.totalorder %s93, %s94
    %p105 = scmp.eq.s32.totalorder %s26, 0
    %p106 = por %p104, %p105
    %p107 = scmp.ne.s32.totalorder %s93, %s94
    %p108 = scmp.eq.s32.totalorder %s27, 2
    %p109 = por %p107, %p108
    %p111 = scmp.ne.s32.totalorder %s94, %s110
    %p112 = scmp.eq.s32.totalorder %s27, 0
    %p113 = por %p111, %p112
    %s114 = ssub.s32 %s29, %s36
    %p115 = scmp.eq.s32.totalorder %s114, 0
    %s117 = sadd.s32 %s116, 1
    %s118 = scalar_select %p115, %s116, %s117
    %p121 = pneg %p115
    %p122 = scmp.eq.s32.totalorder %s21, 2
    %p123 = por %p121, %p122
    %p124 = scmp.ne.s32.totalorder %s116, %s119
    %p125 = scmp.eq.s32.totalorder %s21, 0
    %p126 = por %p124, %p125
    %p127 = scmp.ne.s32.totalorder %s116, %s119
    %p128 = scmp.eq.s32.totalorder %s26, 2
    %p129 = por %p127, %p128
    %p130 = scmp.ne.s32.totalorder %s119, %s120
    %p131 = scmp.eq.s32.totalorder %s26, 0
    %p132 = por %p130, %p131
    %p133 = scmp.ne.s32.totalorder %s119, %s120
    %p134 = scmp.eq.s32.totalorder %s27, 2
    %p135 = por %p133, %p134
    %p137 = scmp.ne.s32.totalorder %s120, %s136
    %p138 = scmp.eq.s32.totalorder %s27, 0
    %p139 = por %p137, %p138
    %s141 = sadd.s32 %s140, 1
    %p144 = scmp.eq.s32.totalorder %s21, 2
    %p145 = scmp.ne.s32.totalorder %s140, %s142
    %p146 = scmp.eq.s32.totalorder %s21, 0
    %p147 = por %p145, %p146
    %p148 = scmp.ne.s32.totalorder %s140, %s142
    %p149 = scmp.eq.s32.totalorder %s26, 2
    %p150 = por %p148, %p149
    %p151 = scmp.ne.s32.totalorder %s142, %s143
    %p152 = scmp.eq.s32.totalorder %s26, 0
    %p153 = por %p151, %p152
    %p154 = scmp.ne.s32.totalorder %s142, %s143
    %p155 = scmp.eq.s32.totalorder %s27, 2
    %p156 = por %p154, %p155
    %p158 = scmp.ne.s32.totalorder %s143, %s157
    %p159 = scmp.eq.s32.totalorder %s27, 0
    %p160 = por %p158, %p159
    %s161 = ssub.s32 %s28, %s40
    %p162 = scmp.eq.s32.totalorder %s161, 0
    %s164 = sadd.s32 %s163, 1
    %s165 = scalar_select %p162, %s163, %s164
    %p168 = pneg %p162
    %p169 = scmp.eq.s32.totalorder %s21, 2
    %p170 = por %p168, %p169
    %p171 = scmp.ne.s32.totalorder %s163, %s166
    %p172 = scmp.eq.s32.totalorder %s21, 0
    %p173 = por %p171, %p172
    %p174 = scmp.ne.s32.totalorder %s163, %s166
    %p175 = scmp.eq.s32.totalorder %s26, 2
    %p176 = por %p174, %p175
    %p177 = scmp.ne.s32.totalorder %s166, %s167
    %p178 = scmp.eq.s32.totalorder %s26, 0
    %p179 = por %p177, %p178
    %p180 = scmp.ne.s32.totalorder %s166, %s167
    %p181 = scmp.eq.s32.totalorder %s27, 2
    %p182 = por %p180, %p181
    %p184 = scmp.ne.s32.totalorder %s167, %s183
    %p185 = scmp.eq.s32.totalorder %s27, 0
    %p186 = por %p184, %p185
    %s187 = ssub.s32 %s28, %s40
    %p188 = scmp.eq.s32.totalorder %s187, 0
    %s190 = sadd.s32 %s189, 1
    %s191 = scalar_select %p188, %s189, %s190
    %p194 = pneg %p188
    %p195 = scmp.eq.s32.totalorder %s21, 2
    %p196 = por %p194, %p195
    %p197 = scmp.ne.s32.totalorder %s189, %s192
    %p198 = scmp.eq.s32.totalorder %s21, 0
    %p199 = por %p197, %p198
    %p200 = scmp.ne.s32.totalorder %s189, %s192
    %p201 = scmp.eq.s32.totalorder %s26, 2
    %p202 = por %p200, %p201
    %p203 = scmp.ne.s32.totalorder %s192, %s193
    %p204 = scmp.eq.s32.totalorder %s26, 0
    %p205 = por %p203, %p204
    %p206 = scmp.ne.s32.totalorder %s192, %s193
    %p207 = scmp.eq.s32.totalorder %s27, 2
    %p208 = por %p206, %p207
    %p210 = scmp.ne.s32.totalorder %s193, %s209
    %p211 = scmp.eq.s32.totalorder %s27, 0
    %p212 = por %p210, %p211
    %s213 = ssub.s32 %s28, %s40
    %p214 = scmp.eq.s32.totalorder %s213, 0
    %s216 = sadd.s32 %s215, 1
    %s217 = scalar_select %p214, %s215, %s216
    %p220 = pneg %p214
    %p221 = scmp.eq.s32.totalorder %s21, 2
    %p222 = por %p220, %p221
    %p223 = scmp.ne.s32.totalorder %s215, %s218
    %p224 = scmp.eq.s32.totalorder %s21, 0
    %p225 = por %p223, %p224
    %p226 = scmp.ne.s32.totalorder %s215, %s218
    %p227 = scmp.eq.s32.totalorder %s26, 2
    %p228 = por %p226, %p227
    %p229 = scmp.ne.s32.totalorder %s218, %s219
    %p230 = scmp.eq.s32.totalorder %s26, 0
    %p231 = por %p229, %p230
    %p232 = scmp.ne.s32.totalorder %s218, %s219
    %p233 = scmp.eq.s32.totalorder %s27, 2
    %p234 = por %p232, %p233
    %p236 = scmp.ne.s32.totalorder %s219, %s235
    %p237 = scmp.eq.s32.totalorder %s27, 0
    %p238 = por %p236, %p237
    %s239 = ssub.s32 %s28, %s40
    %p240 = scmp.eq.s32.totalorder %s239, 0
    %s242 = sadd.s32 %s241, 1
    %s243 = scalar_select %p240, %s241, %s242
    %p246 = pneg %p240
    %p247 = scmp.eq.s32.totalorder %s21, 2
    %p248 = por %p246, %p247
    %p249 = scmp.ne.s32.totalorder %s241, %s244
    %p250 = scmp.eq.s32.totalorder %s21, 0
    %p251 = por %p249, %p250
    %p252 = scmp.ne.s32.totalorder %s241, %s244
    %p253 = scmp.eq.s32.totalorder %s26, 2
    %p254 = por %p252, %p253
    %p255 = scmp.ne.s32.totalorder %s244, %s245
    %p256 = scmp.eq.s32.totalorder %s26, 0
    %p257 = por %p255, %p256
    %p258 = scmp.ne.s32.totalorder %s244, %s245
    %p259 = scmp.eq.s32.totalorder %s27, 2
    %p260 = por %p258, %p259
    %p262 = scmp.ne.s32.totalorder %s245, %s261
    %p263 = scmp.eq.s32.totalorder %s27, 0
    %p264 = por %p262, %p263
    %s265 = ssub.s32 %s28, %s40
    %p266 = scmp.eq.s32.totalorder %s265, 0
    %s268 = sadd.s32 %s267, 1
    %s269 = scalar_select %p266, %s267, %s268
    %p272 = pneg %p266
    %p273 = scmp.eq.s32.totalorder %s21, 2
    %p274 = por %p272, %p273
    %p275 = scmp.ne.s32.totalorder %s267, %s270
    %p276 = scmp.eq.s32.totalorder %s21, 0
    %p277 = por %p275, %p276
    %p278 = scmp.ne.s32.totalorder %s267, %s270
    %p279 = scmp.eq.s32.totalorder %s26, 2
    %p280 = por %p278, %p279
    %p281 = scmp.ne.s32.totalorder %s270, %s271
    %p282 = scmp.eq.s32.totalorder %s26, 0
    %p283 = por %p281, %p282
    %p284 = scmp.ne.s32.totalorder %s270, %s271
    %p285 = scmp.eq.s32.totalorder %s27, 2
    %p286 = por %p284, %p285
    %p288 = scmp.ne.s32.totalorder %s271, %s287
    %p289 = scmp.eq.s32.totalorder %s27, 0
    %p290 = por %p288, %p289
    %s291 = ssub.s32 %s28, %s40
    %p292 = scmp.eq.s32.totalorder %s291, 0
    %s294 = sadd.s32 %s293, 1
    %s295 = scalar_select %p292, %s293, %s294
    %p298 = pneg %p292
    %p299 = scmp.eq.s32.totalorder %s21, 2
    %p300 = por %p298, %p299
    %p301 = scmp.ne.s32.totalorder %s293, %s296
    %p302 = scmp.eq.s32.totalorder %s21, 0
    %p303 = por %p301, %p302
    %p304 = scmp.ne.s32.totalorder %s293, %s296
    %p305 = scmp.eq.s32.totalorder %s26, 2
    %p306 = por %p304, %p305
    %p307 = scmp.ne.s32.totalorder %s296, %s297
    %p308 = scmp.eq.s32.totalorder %s26, 0
    %p309 = por %p307, %p308
    %p310 = scmp.ne.s32.totalorder %s296, %s297
    %p311 = scmp.eq.s32.totalorder %s27, 2
    %p312 = por %p310, %p311
    %p314 = scmp.ne.s32.totalorder %s297, %s313
    %p315 = scmp.eq.s32.totalorder %s27, 0
    %p316 = por %p314, %p315
    %s318 = sadd.s32 %s317, 1
    %p321 = scmp.eq.s32.totalorder %s21, 2
    %p322 = scmp.ne.s32.totalorder %s317, %s319
    %p323 = scmp.eq.s32.totalorder %s21, 0
    %p324 = por %p322, %p323
    %p325 = scmp.ne.s32.totalorder %s317, %s319
    %p326 = scmp.eq.s32.totalorder %s26, 2
    %p327 = por %p325, %p326
    %p328 = scmp.ne.s32.totalorder %s319, %s320
    %p329 = scmp.eq.s32.totalorder %s26, 0
    %p330 = por %p328, %p329
    %p331 = scmp.ne.s32.totalorder %s319, %s320
    %p332 = scmp.eq.s32.totalorder %s27, 2
    %p333 = por %p331, %p332
    %p335 = scmp.ne.s32.totalorder %s320, %s334
    %p336 = scmp.eq.s32.totalorder %s27, 0
    %p337 = por %p335, %p336
    %s339 = sadd.s32 %s338, 1
    %p342 = scmp.eq.s32.totalorder %s21, 2
    %p343 = scmp.ne.s32.totalorder %s338, %s340
    %p344 = scmp.eq.s32.totalorder %s21, 0
    %p345 = por %p343, %p344
    %p346 = scmp.ne.s32.totalorder %s338, %s340
    %p347 = scmp.eq.s32.totalorder %s26, 2
    %p348 = por %p346, %p347
    %p349 = scmp.ne.s32.totalorder %s340, %s341
    %p350 = scmp.eq.s32.totalorder %s26, 0
    %p351 = por %p349, %p350
    %p352 = scmp.ne.s32.totalorder %s340, %s341
    %p353 = scmp.eq.s32.totalorder %s27, 2
    %p354 = por %p352, %p353
    %p356 = scmp.ne.s32.totalorder %s341, %s355
    %p357 = scmp.eq.s32.totalorder %s27, 0
    %p358 = por %p356, %p357
    %s360 = sadd.s32 %s359, 1
    %p363 = scmp.eq.s32.totalorder %s21, 2
    %p364 = scmp.ne.s32.totalorder %s359, %s361
    %p365 = scmp.eq.s32.totalorder %s21, 0
    %p366 = por %p364, %p365
    %p367 = scmp.ne.s32.totalorder %s359, %s361
    %p368 = scmp.eq.s32.totalorder %s26, 2
    %p369 = por %p367, %p368
    %p370 = scmp.ne.s32.totalorder %s361, %s362
    %p371 = scmp.eq.s32.totalorder %s26, 0
    %p372 = por %p370, %p371
    %p373 = scmp.ne.s32.totalorder %s361, %s362
    %p374 = scmp.eq.s32.totalorder %s27, 2
    %p375 = por %p373, %p374
    %p377 = scmp.ne.s32.totalorder %s362, %s376
    %p378 = scmp.eq.s32.totalorder %s27, 0
    %p379 = por %p377, %p378
    %s381 = sadd.s32 %s380, 1
    %p384 = scmp.eq.s32.totalorder %s21, 2
    %p385 = scmp.ne.s32.totalorder %s380, %s382
    %p386 = scmp.eq.s32.totalorder %s21, 0
    %p387 = por %p385, %p386
    %p388 = scmp.ne.s32.totalorder %s380, %s382
    %p389 = scmp.eq.s32.totalorder %s26, 2
    %p390 = por %p388, %p389
    %p391 = scmp.ne.s32.totalorder %s382, %s383
    %p392 = scmp.eq.s32.totalorder %s26, 0
    %p393 = por %p391, %p392
    %p394 = scmp.ne.s32.totalorder %s382, %s383
    %p395 = scmp.eq.s32.totalorder %s27, 2
    %p396 = por %p394, %p395
    %p398 = scmp.ne.s32.totalorder %s383, %s397
    %p399 = scmp.eq.s32.totalorder %s27, 0
    %p400 = por %p398, %p399
    %s402 = sadd.s32 %s401, 1
    %p405 = scmp.eq.s32.totalorder %s21, 2
    %p406 = scmp.ne.s32.totalorder %s401, %s403
    %p407 = scmp.eq.s32.totalorder %s21, 0
    %p408 = por %p406, %p407
    %p409 = scmp.ne.s32.totalorder %s401, %s403
    %p410 = scmp.eq.s32.totalorder %s26, 2
    %p411 = por %p409, %p410
    %p412 = scmp.ne.s32.totalorder %s403, %s404
    %p413 = scmp.eq.s32.totalorder %s26, 0
    %p414 = por %p412, %p413
    %p415 = scmp.ne.s32.totalorder %s403, %s404
    %p416 = scmp.eq.s32.totalorder %s27, 2
    %p417 = por %p415, %p416
    %p419 = scmp.ne.s32.totalorder %s404, %s418
    %p420 = scmp.eq.s32.totalorder %s27, 0
    %p421 = por %p419, %p420
    %p422 = scmp.le.s32.totalorder 1, %s21
    %p423 = scmp.lt.s32.totalorder %s21, 4
    %p424 = pnand %p422, %p423
    %p425 = pneg %p424
    // Predicated region
    $region9: #{simclr_graph_cl_forward.1} parent=5 // pred_check
      _
    $region10: #{simclr_graph_cl_forward.1} parent=5 // pred_check_branch
      %427 = sbr.rel (%p424) target = $region12
    $region11: #{simclr_graph_cl_forward.1} parent=5 // pred_region
      %s428 = ssub.s32 %s21, 1
      // Predicated region
      $region13: #{simclr_graph_cl_forward.1} parent=11 // pred_check
        %p429 = pneg %p59
      $region14: #{simclr_graph_cl_forward.1} parent=11 // pred_check_branch
        %431 = sbr.rel (%p429) target = $region16
      $region15: #{simclr_graph_cl_forward.1} parent=11 // pred_region
        %s432 = smul.u32 16, %s31
        %p433 = scmp.lt.s32.totalorder %s432, 15
        %s434 = scalar_select %p433, %s432, 15
        %s435 = smul.addr %s434, 4
        %s436 = scalar_lea.vmem %s0, %s435
        %s437 = smul.u32 16, %s31
      $region16: #{simclr_graph_cl_forward.1} parent=11 // pred_fallthru
        _
      // Predicated region
      $region17: #{simclr_graph_cl_forward.1} parent=11 // pred_check
        %p438 = pneg %p80
      $region18: #{simclr_graph_cl_forward.1} parent=11 // pred_check_branch
        %440 = sbr.rel (%p438) target = $region20
      $region19: #{simclr_graph_cl_forward.1} parent=11 // pred_region
        _
      $region20: #{simclr_graph_cl_forward.1} parent=11 // pred_fallthru
        _
      // Predicated region
      $region21: #{simclr_graph_cl_forward.1} parent=11 // pred_check
        %p441 = pneg %p106
      $region22: #{simclr_graph_cl_forward.1} parent=11 // pred_check_branch
        %443 = sbr.rel (%p441) target = $region24
      $region23: #{simclr_graph_cl_forward.1} parent=11 // pred_region
        %s444 = smul.u32 16, %s31
        %p445 = scmp.lt.s32.totalorder %s444, 15
        %s446 = scalar_select %p445, %s444, 15
        %s447 = smul.addr %s446, 8
        %s448 = scalar_lea.vmem %s2, %s447
        %s449 = smul.u32 16, %s31
      $region24: #{simclr_graph_cl_forward.1} parent=11 // pred_fallthru
        _
      // Predicated region
      $region25: #{simclr_graph_cl_forward.1} parent=11 // pred_check
        %p450 = pneg %p132
      $region26: #{simclr_graph_cl_forward.1} parent=11 // pred_check_branch
        %452 = sbr.rel (%p450) target = $region28
      $region27: #{simclr_graph_cl_forward.1} parent=11 // pred_region
        %p453 = scmp.lt.s32.totalorder %s31, 0
        %s454 = scalar_select %p453, %s31, 0
        %s455 = smul.addr %s454, 4
        %s456 = scalar_lea.vmem %s3, %s455
      $region28: #{simclr_graph_cl_forward.1} parent=11 // pred_fallthru
        _
      // Predicated region
      $region29: #{simclr_graph_cl_forward.1} parent=11 // pred_check
        %p457 = pneg %p153
      $region30: #{simclr_graph_cl_forward.1} parent=11 // pred_check_branch
        %459 = sbr.rel (%p457) target = $region32
      $region31: #{simclr_graph_cl_forward.1} parent=11 // pred_region
        _
      $region32: #{simclr_graph_cl_forward.1} parent=11 // pred_fallthru
        _
      // Predicated region
      $region33: #{simclr_graph_cl_forward.1} parent=11 // pred_check
        %p460 = pneg %p330
      $region34: #{simclr_graph_cl_forward.1} parent=11 // pred_check_branch
        %462 = sbr.rel (%p460) target = $region36
      $region35: #{simclr_graph_cl_forward.1} parent=11 // pred_region
        _
      $region36: #{simclr_graph_cl_forward.1} parent=11 // pred_fallthru
        _
      // Predicated region
      $region37: #{simclr_graph_cl_forward.1} parent=11 // pred_check
        %p463 = pneg %p351
      $region38: #{simclr_graph_cl_forward.1} parent=11 // pred_check_branch
        %465 = sbr.rel (%p463) target = $region40
      $region39: #{simclr_graph_cl_forward.1} parent=11 // pred_region
        _
      $region40: #{simclr_graph_cl_forward.1} parent=11 // pred_fallthru
        _
      // Predicated region
      $region41: #{simclr_graph_cl_forward.1} parent=11 // pred_check
        %p466 = pneg %p372
      $region42: #{simclr_graph_cl_forward.1} parent=11 // pred_check_branch
        %468 = sbr.rel (%p466) target = $region44
      $region43: #{simclr_graph_cl_forward.1} parent=11 // pred_region
        _
      $region44: #{simclr_graph_cl_forward.1} parent=11 // pred_fallthru
        _
      // Predicated region
      $region45: #{simclr_graph_cl_forward.1} parent=11 // pred_check
        %p469 = pneg %p393
      $region46: #{simclr_graph_cl_forward.1} parent=11 // pred_check_branch
        %471 = sbr.rel (%p469) target = $region48
      $region47: #{simclr_graph_cl_forward.1} parent=11 // pred_region
        _
      $region48: #{simclr_graph_cl_forward.1} parent=11 // pred_fallthru
        _
    $region12: #{simclr_graph_cl_forward.1} parent=5 // pred_fallthru
      _
    %p472 = scmp.lt.s32.totalorder %s21, 3
    // Predicated region
    $region49: #{simclr_graph_cl_forward.1} parent=5 // pred_check
      %p473 = pneg %p472
    $region50: #{simclr_graph_cl_forward.1} parent=5 // pred_check_branch
      %475 = sbr.rel (%p473) target = $region52
    $region51: #{simclr_graph_cl_forward.1} parent=5 // pred_region
      // Predicated region
      $region53: #{simclr_graph_cl_forward.1} parent=51 // pred_check
        %p476 = pneg %p173
      $region54: #{simclr_graph_cl_forward.1} parent=51 // pred_check_branch
        %478 = sbr.rel (%p476) target = $region56
      $region55: #{simclr_graph_cl_forward.1} parent=51 // pred_region
        %p479 = scmp.lt.s32.totalorder %s28, 2
        %s480 = scalar_select %p479, %s28, 2
        %s481 = smul.addr %s480, 16
        %s482 = smul.addr %s481, 4
        %s483 = scalar_lea.vmem %s5, %s482
      $region56: #{simclr_graph_cl_forward.1} parent=51 // pred_fallthru
        _
      // Predicated region
      $region57: #{simclr_graph_cl_forward.1} parent=51 // pred_check
        %p484 = pneg %p199
      $region58: #{simclr_graph_cl_forward.1} parent=51 // pred_check_branch
        %486 = sbr.rel (%p484) target = $region60
      $region59: #{simclr_graph_cl_forward.1} parent=51 // pred_region
        %p487 = scmp.lt.s32.totalorder %s28, 2
        %s488 = scalar_select %p487, %s28, 2
        %s489 = scalar_lea.vmem %s6, %s488
      $region60: #{simclr_graph_cl_forward.1} parent=51 // pred_fallthru
        _
      // Predicated region
      $region61: #{simclr_graph_cl_forward.1} parent=51 // pred_check
        %p490 = pneg %p225
      $region62: #{simclr_graph_cl_forward.1} parent=51 // pred_check_branch
        %492 = sbr.rel (%p490) target = $region64
      $region63: #{simclr_graph_cl_forward.1} parent=51 // pred_region
        %p493 = scmp.lt.s32.totalorder %s28, 2
        %s494 = scalar_select %p493, %s28, 2
        %s495 = smul.addr %s494, 16
        %s496 = smul.addr %s495, 4
        %s497 = scalar_lea.vmem %s7, %s496
      $region64: #{simclr_graph_cl_forward.1} parent=51 // pred_fallthru
        _
      // Predicated region
      $region65: #{simclr_graph_cl_forward.1} parent=51 // pred_check
        %p498 = pneg %p251
      $region66: #{simclr_graph_cl_forward.1} parent=51 // pred_check_branch
        %500 = sbr.rel (%p498) target = $region68
      $region67: #{simclr_graph_cl_forward.1} parent=51 // pred_region
        %p501 = scmp.lt.s32.totalorder %s28, 2
        %s502 = scalar_select %p501, %s28, 2
        %s503 = scalar_lea.vmem %s8, %s502
      $region68: #{simclr_graph_cl_forward.1} parent=51 // pred_fallthru
        _
      // Predicated region
      $region69: #{simclr_graph_cl_forward.1} parent=51 // pred_check
        %p504 = pneg %p277
      $region70: #{simclr_graph_cl_forward.1} parent=51 // pred_check_branch
        %506 = sbr.rel (%p504) target = $region72
      $region71: #{simclr_graph_cl_forward.1} parent=51 // pred_region
        %p507 = scmp.lt.s32.totalorder %s28, 2
        %s508 = scalar_select %p507, %s28, 2
        %s509 = scalar_lea.vmem %s9, %s508
      $region72: #{simclr_graph_cl_forward.1} parent=51 // pred_fallthru
        _
      // Predicated region
      $region73: #{simclr_graph_cl_forward.1} parent=51 // pred_check
        %p510 = pneg %p303
      $region74: #{simclr_graph_cl_forward.1} parent=51 // pred_check_branch
        %512 = sbr.rel (%p510) target = $region76
      $region75: #{simclr_graph_cl_forward.1} parent=51 // pred_region
        %p513 = scmp.lt.s32.totalorder %s28, 2
        %s514 = scalar_select %p513, %s28, 2
        %s515 = scalar_lea.vmem %s10, %s514
      $region76: #{simclr_graph_cl_forward.1} parent=51 // pred_fallthru
        _
    $region52: #{simclr_graph_cl_forward.1} parent=5 // pred_fallthru
      _
    %p516 = scmp.le.s32.totalorder 1, %s21
    %p517 = scmp.lt.s32.totalorder %s21, 4
    %p518 = pnand %p516, %p517
    %p519 = pneg %p518
    // Predicated region
    $region77: #{simclr_graph_cl_forward.1} parent=5 // pred_check
      _
    $region78: #{simclr_graph_cl_forward.1} parent=5 // pred_check_branch
      %521 = sbr.rel (%p518) target = $region80
    $region79: #{simclr_graph_cl_forward.1} parent=5 // pred_region
      %s522 = ssub.s32 %s21, 1
      %s523 = smul.u32 16, %s31
      %p524 = scmp.lt.s32.totalorder %s523, 15
      %s525 = scalar_select %p524, %s523, 15
      %s526 = smul.addr %s525, 4
      %s527 = scalar_lea.vmem %s0, %s526
      %p528 = pneg %p59
      %p529 = pneg %p56
      %p530 = pneg %p80
      %p531 = pneg %p77
      %s532 = smul.u32 16, %s31
      %p533 = scmp.lt.s32.totalorder %s532, 15
      %s534 = scalar_select %p533, %s532, 15
      %s535 = smul.addr %s534, 8
      %s536 = scalar_lea.vmem %s2, %s535
      %p537 = pneg %p106
      %p538 = pneg %p103
      %p539 = scmp.lt.s32.totalorder %s31, 0
      %s540 = scalar_select %p539, %s31, 0
      %s541 = smul.addr %s540, 4
      %s542 = scalar_lea.vmem %s3, %s541
      %p543 = pneg %p132
      %p544 = pneg %p129
      %p545 = pneg %p153
      %p546 = pneg %p150
      %p547 = scmp.lt.s32.totalorder %s30, 2
      %s548 = scalar_select %p547, %s30, 2
      %s549 = smul.addr %s548, 16
      %s550 = smul.addr %s549, 4
      %s551 = scalar_lea.vmem %s5, %s550
      %p552 = pneg %p179
      %p553 = pneg %p176
      %p554 = scmp.lt.s32.totalorder %s30, 2
      %s555 = scalar_select %p554, %s30, 2
      %s556 = scalar_lea.vmem %s6, %s555
      %p557 = pneg %p205
      %p558 = pneg %p202
      %p559 = scmp.lt.s32.totalorder %s30, 2
      %s560 = scalar_select %p559, %s30, 2
      %s561 = smul.addr %s560, 16
      %s562 = smul.addr %s561, 4
      %s563 = scalar_lea.vmem %s7, %s562
      %p564 = pneg %p231
      %p565 = pneg %p228
      %p566 = scmp.lt.s32.totalorder %s30, 2
      %s567 = scalar_select %p566, %s30, 2
      %s568 = scalar_lea.vmem %s8, %s567
      %p569 = pneg %p257
      %p570 = pneg %p254
      %p571 = scmp.lt.s32.totalorder %s30, 2
      %s572 = scalar_select %p571, %s30, 2
      %s573 = scalar_lea.vmem %s9, %s572
      %p574 = pneg %p283
      %p575 = pneg %p280
      %p576 = scmp.lt.s32.totalorder %s30, 2
      %s577 = scalar_select %p576, %s30, 2
      %s578 = scalar_lea.vmem %s10, %s577
      %p579 = pneg %p309
      %p580 = pneg %p306
      %p581 = pneg %p330
      %p582 = pneg %p327
      %p583 = pneg %p351
      %p584 = pneg %p348
      %p585 = pneg %p372
      %p586 = pneg %p369
      %p587 = pneg %p393
      %p588 = pneg %p390
      %p589 = pneg %p414
      %p590 = pneg %p411
      %s591 = smul.u32 16, %s31
      %p592 = scmp.lt.s32.totalorder %s591, 15
      %s593 = scalar_select %p592, %s591, 15
      %s594 = smul.addr %s593, 4
      %s595 = scalar_lea.vmem %s0, %s594
      %s596 = smul.u32 16, %s31
      %s597 = smul.u32 16, %s31
      %p598 = scmp.lt.s32.totalorder %s597, 15
      %s599 = scalar_select %p598, %s597, 15
      %s600 = smul.addr %s599, 8
      %s601 = scalar_lea.vmem %s2, %s600
      %s602 = smul.u32 16, %s31
      %p603 = scmp.lt.s32.totalorder %s31, 0
      %s604 = scalar_select %p603, %s31, 0
      %s605 = smul.addr %s604, 4
      %s606 = scalar_lea.vmem %s3, %s605
      %p607 = scmp.lt.s32.totalorder %s30, 2
      %s608 = scalar_select %p607, %s30, 2
      %s609 = smul.addr %s608, 16
      %s610 = smul.addr %s609, 4
      %s611 = scalar_lea.vmem %s5, %s610
      %p612 = scmp.lt.s32.totalorder %s30, 2
      %s613 = scalar_select %p612, %s30, 2
      %s614 = scalar_lea.vmem %s6, %s613
      %p615 = scmp.lt.s32.totalorder %s30, 2
      %s616 = scalar_select %p615, %s30, 2
      %s617 = smul.addr %s616, 16
      %s618 = smul.addr %s617, 4
      %s619 = scalar_lea.vmem %s7, %s618
      %p620 = scmp.lt.s32.totalorder %s30, 2
      %s621 = scalar_select %p620, %s30, 2
      %s622 = scalar_lea.vmem %s8, %s621
      %p623 = scmp.lt.s32.totalorder %s30, 2
      %s624 = scalar_select %p623, %s30, 2
      %s625 = scalar_lea.vmem %s9, %s624
      %p626 = scmp.lt.s32.totalorder %s30, 2
      %s627 = scalar_select %p626, %s30, 2
      %s628 = scalar_lea.vmem %s10, %s627
      %p630 = scmp.eq.s32.totalorder %s30, 0
      %p631 = scmp.eq.s32.totalorder %s31, 0
      %p632 = pnand %p630, %p631
      %p633 = pneg %p632
      // Predicated region
      $region81: #{simclr_graph_cl_forward.1} parent=79 // pred_check
        _
      $region82: #{simclr_graph_cl_forward.1} parent=79 // pred_check_branch
        %635 = sbr.rel (%p632) target = $region84
      $region83: #{simclr_graph_cl_forward.1} parent=79 // pred_region
        %v636 = vld [vmem:[%s1] sm:$0xf]
        %v637 = vld [vmem:[%s1 + $0x4] sm:$0xf]
        %v638 = vld [vmem:[%s1 + $0x8] sm:$0xf]
        %v639 = vld [vmem:[%s1 + $0xc] sm:$0xf]
        %v640 = vld [vmem:[%s1 + $0x10] sm:$0xf]
        %v641 = vld [vmem:[%s1 + $0x14] sm:$0xf]
        %v642 = vld [vmem:[%s1 + $0x18] sm:$0xf]
        %v643 = vld [vmem:[%s1 + $0x1c] sm:$0xf]
        %v644 = vld [vmem:[%s1 + $0x20] sm:$0xf]
        %v645 = vld [vmem:[%s1 + $0x24] sm:$0xf]
        %v646 = vld [vmem:[%s1 + $0x28] sm:$0xf]
        %v647 = vld [vmem:[%s1 + $0x2c] sm:$0xf]
        %v648 = vld [vmem:[%s1 + $0x30] sm:$0xf]
        %v649 = vld [vmem:[%s1 + $0x34] sm:$0xf]
        %v650 = vld [vmem:[%s1 + $0x38] sm:$0xf]
        %v651 = vld [vmem:[%s1 + $0x3c] sm:$0xf]
        %v668 = vunpack.c.l.b16 %v636
        %v669 = vunpack.c.l.b16 %v637
        %v670 = vunpack.c.l.b16 %v638
        %v671 = vunpack.c.l.b16 %v639
        %v672 = vunpack.c.l.b16 %v640
        %v673 = vunpack.c.l.b16 %v641
        %v674 = vunpack.c.l.b16 %v642
        %v675 = vunpack.c.l.b16 %v643
        %v676 = vunpack.c.l.b16 %v644
        %v677 = vunpack.c.l.b16 %v645
        %v678 = vunpack.c.l.b16 %v646
        %v679 = vunpack.c.l.b16 %v647
        %v680 = vunpack.c.l.b16 %v648
        %v681 = vunpack.c.l.b16 %v649
        %v682 = vunpack.c.l.b16 %v650
        %v683 = vunpack.c.l.b16 %v651
        %v684 = vpack.c.b16 %v669, %v668
        %v685 = vpack.c.b16 %v671, %v670
        %v686 = vpack.c.b16 %v673, %v672
        %v687 = vpack.c.b16 %v675, %v674
        %v688 = vpack.c.b16 %v677, %v676
        %v689 = vpack.c.b16 %v679, %v678
        %v690 = vpack.c.b16 %v681, %v680
        %v691 = vpack.c.b16 %v683, %v682
        %700 = vst [vmem:[#allocation2] sm:$0xff] %v684
        %701 = vst [vmem:[#allocation2 + $0x8] sm:$0xff] %v685
        %702 = vst [vmem:[#allocation2 + $0x10] sm:$0xff] %v686
        %703 = vst [vmem:[#allocation2 + $0x18] sm:$0xff] %v687
        %704 = vst [vmem:[#allocation2 + $0x20] sm:$0xff] %v688
        %705 = vst [vmem:[#allocation2 + $0x28] sm:$0xff] %v689
        %706 = vst [vmem:[#allocation2 + $0x30] sm:$0xff] %v690
        %707 = vst [vmem:[#allocation2 + $0x38] sm:$0xff] %v691
      $region84: #{simclr_graph_cl_forward.1} parent=79 // pred_fallthru
        _
      // Predicated region
      $region85: #{simclr_graph_cl_forward.1} parent=79 // pred_check
        %p708 = pneg %p631
      $region86: #{simclr_graph_cl_forward.1} parent=79 // pred_check_branch
        %710 = sbr.rel (%p708) target = $region88
      $region87: #{simclr_graph_cl_forward.1} parent=79 // pred_region
        %711 = vst [vmem:[#allocation4] sm:$0x3] 0.0
        %s712 = smul.u32 %s30, 8
        %s713 = scalar_lea.vmem [#allocation5], %s712
        %714 = vst [vmem:[%s713] sm:$0xff] 0.0
      $region88: #{simclr_graph_cl_forward.1} parent=79 // pred_fallthru
        _
      %v715 = vld [vmem:[%s595] sm:$0xf]
      %v716 = vld [vmem:[%s595 + $0x4] sm:$0xf]
      %v717 = vld [vmem:[%s595 + $0x8] sm:$0xf]
      %v718 = vld [vmem:[%s595 + $0xc] sm:$0xf]
      %v719 = vld [vmem:[%s595 + $0x10] sm:$0xf]
      %v720 = vld [vmem:[%s595 + $0x14] sm:$0xf]
      %v721 = vld [vmem:[%s595 + $0x18] sm:$0xf]
      %v722 = vld [vmem:[%s595 + $0x1c] sm:$0xf]
      %v723 = vld [vmem:[%s595 + $0x20] sm:$0xf]
      %v724 = vld [vmem:[%s595 + $0x24] sm:$0xf]
      %v725 = vld [vmem:[%s595 + $0x28] sm:$0xf]
      %v726 = vld [vmem:[%s595 + $0x2c] sm:$0xf]
      %v727 = vld [vmem:[%s595 + $0x30] sm:$0xf]
      %v728 = vld [vmem:[%s595 + $0x34] sm:$0xf]
      %v729 = vld [vmem:[%s595 + $0x38] sm:$0xf]
      %v730 = vld [vmem:[%s595 + $0x3c] sm:$0xf]
      %v731 = vld [vmem:[#allocation2] sm:$0xff]
      %v732 = vld [vmem:[#allocation2 + $0x8] sm:$0xff]
      %v733 = vld [vmem:[#allocation2 + $0x10] sm:$0xff]
      %v734 = vld [vmem:[#allocation2 + $0x18] sm:$0xff]
      %v735 = vld [vmem:[#allocation2 + $0x20] sm:$0xff]
      %v736 = vld [vmem:[#allocation2 + $0x28] sm:$0xff]
      %v737 = vld [vmem:[#allocation2 + $0x30] sm:$0xff]
      %v738 = vld [vmem:[#allocation2 + $0x38] sm:$0xff]
      %v755 = vunpack.c.l.b16 %v715
      %v756 = vunpack.c.l.b16 %v716
      %v757 = vunpack.c.l.b16 %v717
      %v758 = vunpack.c.l.b16 %v718
      %v759 = vunpack.c.l.b16 %v719
      %v760 = vunpack.c.l.b16 %v720
      %v761 = vunpack.c.l.b16 %v721
      %v762 = vunpack.c.l.b16 %v722
      %v763 = vunpack.c.l.b16 %v723
      %v764 = vunpack.c.l.b16 %v724
      %v765 = vunpack.c.l.b16 %v725
      %v766 = vunpack.c.l.b16 %v726
      %v767 = vunpack.c.l.b16 %v727
      %v768 = vunpack.c.l.b16 %v728
      %v769 = vunpack.c.l.b16 %v729
      %v770 = vunpack.c.l.b16 %v730
      %v771 = vpack.c.b16 %v756, %v755
      %v772 = vpack.c.b16 %v758, %v757
      %v773 = vpack.c.b16 %v760, %v759
      %v774 = vpack.c.b16 %v762, %v761
      %v775 = vpack.c.b16 %v764, %v763
      %v776 = vpack.c.b16 %v766, %v765
      %v777 = vpack.c.b16 %v768, %v767
      %v778 = vpack.c.b16 %v770, %v769
      %787 = vmatprep.subr.bf16.mxu0 0
      %788 = vmatpush1.bf16.msra.mxu0 %v731
      %789 = vmatprep.subr.bf16.mxu0 0
      %790 = vmatpush1.bf16.msra.mxu0 %v732
      %791 = vmatprep.subr.bf16.mxu0 0
      %792 = vmatpush1.bf16.msra.mxu0 %v733
      %793 = vmatprep.subr.bf16.mxu0 0
      %794 = vmatpush1.bf16.msra.mxu0 %v734
      %795 = vmatprep.subr.bf16.mxu0 0
      %796 = vmatpush1.bf16.msra.mxu0 %v735
      %797 = vmatprep.subr.bf16.mxu0 0
      %798 = vmatpush1.bf16.msra.mxu0 %v736
      %799 = vmatprep.subr.bf16.mxu0 0
      %800 = vmatpush1.bf16.msra.mxu0 %v737
      %801 = vmatprep.subr.bf16.mxu0 0
      %802 = vmatpush1.bf16.msra.mxu0 %v738
      %803 = vmatprep.subr.bf16.mxu0 0
      %804 = vmatpush1.bf16.msra.mxu0 0
      %805 = vmatprep.subr.bf16.mxu0 0
      %806 = vmatpush1.bf16.msra.mxu0 0
      %807 = vmatprep.subr.bf16.mxu0 0
      %808 = vmatpush1.bf16.msra.mxu0 0
      %809 = vmatprep.subr.bf16.mxu0 0
      %810 = vmatpush1.bf16.msra.mxu0 0
      %811 = vmatprep.subr.bf16.mxu0 0
      %812 = vmatpush1.bf16.msra.mxu0 0
      %813 = vmatprep.subr.bf16.mxu0 0
      %814 = vmatpush1.bf16.msra.mxu0 0
      %815 = vmatprep.subr.bf16.mxu0 0
      %816 = vmatpush1.bf16.msra.mxu0 0
      %817 = vmatprep.subr.bf16.mxu0 0
      %818 = vmatpush1.bf16.msra.mxu0 0
      %819 = vmatprep.mubr.bf16.mxu0 0
      %820 = vmatmul.mubr.bf16.gmra.mrb[0].mxu0 %v771
      %v821 = vpop.f32.mrb[0].mxu0
      %v822 = vadd.f32 0.0, %v821
      %v823 = vpop.f32.mrb[0].mxu0
      %v824 = vpop.f32.mrb[0].mxu0
      %v825 = vadd.f32 0.0, %v824
      %v826 = vpop.f32.mrb[0].mxu0
      %827 = vmatprep.mubr.bf16.mxu0 0
      %828 = vmatmul.mubr.bf16.gmra.mrb[0].mxu0 %v772
      %v829 = vpop.f32.mrb[0].mxu0
      %v830 = vadd.f32 0.0, %v829
      %v831 = vpop.f32.mrb[0].mxu0
      %v832 = vpop.f32.mrb[0].mxu0
      %v833 = vadd.f32 0.0, %v832
      %v834 = vpop.f32.mrb[0].mxu0
      %835 = vmatprep.mubr.bf16.mxu0 0
      %836 = vmatmul.mubr.bf16.gmra.mrb[0].mxu0 %v773
      %v837 = vpop.f32.mrb[0].mxu0
      %v838 = vadd.f32 0.0, %v837
      %v839 = vpop.f32.mrb[0].mxu0
      %v840 = vpop.f32.mrb[0].mxu0
      %v841 = vadd.f32 0.0, %v840
      %v842 = vpop.f32.mrb[0].mxu0
      %843 = vmatprep.mubr.bf16.mxu0 0
      %844 = vmatmul.mubr.bf16.gmra.mrb[0].mxu0 %v774
      %v845 = vpop.f32.mrb[0].mxu0
      %v846 = vadd.f32 0.0, %v845
      %v847 = vpop.f32.mrb[0].mxu0
      %v848 = vpop.f32.mrb[0].mxu0
      %v849 = vadd.f32 0.0, %v848
      %v850 = vpop.f32.mrb[0].mxu0
      %851 = vmatprep.mubr.bf16.mxu0 0
      %852 = vmatmul.mubr.bf16.gmra.mrb[0].mxu0 %v775
      %v853 = vpop.f32.mrb[0].mxu0
      %v854 = vadd.f32 0.0, %v853
      %v855 = vpop.f32.mrb[0].mxu0
      %v856 = vpop.f32.mrb[0].mxu0
      %v857 = vadd.f32 0.0, %v856
      %v858 = vpop.f32.mrb[0].mxu0
      %859 = vmatprep.mubr.bf16.mxu0 0
      %860 = vmatmul.mubr.bf16.gmra.mrb[0].mxu0 %v776
      %v861 = vpop.f32.mrb[0].mxu0
      %v862 = vadd.f32 0.0, %v861
      %v863 = vpop.f32.mrb[0].mxu0
      %v864 = vpop.f32.mrb[0].mxu0
      %v865 = vadd.f32 0.0, %v864
      %v866 = vpop.f32.mrb[0].mxu0
      %867 = vmatprep.mubr.bf16.mxu0 0
      %868 = vmatmul.mubr.bf16.gmra.mrb[0].mxu0 %v777
      %v869 = vpop.f32.mrb[0].mxu0
      %v870 = vadd.f32 0.0, %v869
      %v871 = vpop.f32.mrb[0].mxu0
      %v872 = vpop.f32.mrb[0].mxu0
      %v873 = vadd.f32 0.0, %v872
      %v874 = vpop.f32.mrb[0].mxu0
      %875 = vmatprep.mubr.bf16.mxu0 0
      %876 = vmatmul.mubr.bf16.gmra.mrb[0].mxu0 %v778
      %v877 = vpop.f32.mrb[0].mxu0
      %v878 = vadd.f32 0.0, %v877
      %v879 = vpop.f32.mrb[0].mxu0
      %v880 = vpop.f32.mrb[0].mxu0
      %v881 = vadd.f32 0.0, %v880
      %v882 = vpop.f32.mrb[0].mxu0
      %883 = vdwg.mxu0
      %v884 = vpack.c.bf16 %v825, %v822
      %v885 = vpack.c.bf16 %v833, %v830
      %v886 = vpack.c.bf16 %v841, %v838
      %v887 = vpack.c.bf16 %v849, %v846
      %v888 = vpack.c.bf16 %v857, %v854
      %v889 = vpack.c.bf16 %v865, %v862
      %v890 = vpack.c.bf16 %v873, %v870
      %v891 = vpack.c.bf16 %v881, %v878
      %v892 = vld [vmem:[%s611] sm:$0xf]
      %v893 = vld [vmem:[%s611 + $0x4] sm:$0xf]
      %v894 = vld [vmem:[%s611 + $0x8] sm:$0xf]
      %v895 = vld [vmem:[%s611 + $0xc] sm:$0xf]
      %v896 = vld [vmem:[%s611 + $0x10] sm:$0xf]
      %v897 = vld [vmem:[%s611 + $0x14] sm:$0xf]
      %v898 = vld [vmem:[%s611 + $0x18] sm:$0xf]
      %v899 = vld [vmem:[%s611 + $0x1c] sm:$0xf]
      %v900 = vld [vmem:[%s611 + $0x20] sm:$0xf]
      %v901 = vld [vmem:[%s611 + $0x24] sm:$0xf]
      %v902 = vld [vmem:[%s611 + $0x28] sm:$0xf]
      %v903 = vld [vmem:[%s611 + $0x2c] sm:$0xf]
      %v904 = vld [vmem:[%s611 + $0x30] sm:$0xf]
      %v905 = vld [vmem:[%s611 + $0x34] sm:$0xf]
      %v906 = vld [vmem:[%s611 + $0x38] sm:$0xf]
      %v907 = vld [vmem:[%s611 + $0x3c] sm:$0xf]
      %v908 = vld [vmem:[%s614] sm:$0x1]
      %v910 = vlaneseq
      %v911 = vshrl.u32 %v910, 7
      %v912 = vsub.s32 0, %v911
      %v913 = vrot.slane %v908, %v912
      %v931 = vunpack.c.l.b16 %v892
      %v932 = vunpack.c.l.b16 %v893
      %v933 = vunpack.c.l.b16 %v894
      %v934 = vunpack.c.l.b16 %v895
      %v935 = vunpack.c.l.b16 %v896
      %v936 = vunpack.c.l.b16 %v897
      %v937 = vunpack.c.l.b16 %v898
      %v938 = vunpack.c.l.b16 %v899
      %v939 = vunpack.c.l.b16 %v900
      %v940 = vunpack.c.l.b16 %v901
      %v941 = vunpack.c.l.b16 %v902
      %v942 = vunpack.c.l.b16 %v903
      %v943 = vunpack.c.l.b16 %v904
      %v944 = vunpack.c.l.b16 %v905
      %v945 = vunpack.c.l.b16 %v906
      %v946 = vunpack.c.l.b16 %v907
      %v947 = vpack.c.b16 %v932, %v931
      %v948 = vpack.c.b16 %v934, %v933
      %v949 = vpack.c.b16 %v936, %v935
      %v950 = vpack.c.b16 %v938, %v937
      %v951 = vpack.c.b16 %v940, %v939
      %v952 = vpack.c.b16 %v942, %v941
      %v953 = vpack.c.b16 %v944, %v943
      %v954 = vpack.c.b16 %v946, %v945
      %963 = vmatprep.subr.bf16.mxu0 0
      %964 = vmatpush1.bf16.msra.mxu0 %v947
      %965 = vmatprep.subr.bf16.mxu0 0
      %966 = vmatpush1.bf16.msra.mxu0 %v948
      %967 = vmatprep.subr.bf16.mxu0 0
      %968 = vmatpush1.bf16.msra.mxu0 %v949
      %969 = vmatprep.subr.bf16.mxu0 0
      %970 = vmatpush1.bf16.msra.mxu0 %v950
      %971 = vmatprep.subr.bf16.mxu0 0
      %972 = vmatpush1.bf16.msra.mxu0 %v951
      %973 = vmatprep.subr.bf16.mxu0 0
      %974 = vmatpush1.bf16.msra.mxu0 %v952
      %975 = vmatprep.subr.bf16.mxu0 0
      %976 = vmatpush1.bf16.msra.mxu0 %v953
      %977 = vmatprep.subr.bf16.mxu0 0
      %978 = vmatpush1.bf16.msra.mxu0 %v954
      %979 = vmatprep.subr.bf16.mxu0 0
      %980 = vmatpush1.bf16.msra.mxu0 0
      %981 = vmatprep.subr.bf16.mxu0 0
      %982 = vmatpush1.bf16.msra.mxu0 0
      %983 = vmatprep.subr.bf16.mxu0 0
      %984 = vmatpush1.bf16.msra.mxu0 0
      %985 = vmatprep.subr.bf16.mxu0 0
      %986 = vmatpush1.bf16.msra.mxu0 0
      %987 = vmatprep.subr.bf16.mxu0 0
      %988 = vmatpush1.bf16.msra.mxu0 0
      %989 = vmatprep.subr.bf16.mxu0 0
      %990 = vmatpush1.bf16.msra.mxu0 0
      %991 = vmatprep.subr.bf16.mxu0 0
      %992 = vmatpush1.bf16.msra.mxu0 0
      %993 = vmatprep.subr.bf16.mxu0 0
      %994 = vmatpush1.bf16.msra.mxu0 0
      %995 = vmatprep.mubr.bf16.mxu0 0
      %996 = vmatmul.mubr.bf16.gmra.mrb[0].mxu0 %v884
      %v997 = vpop.f32.mrb[0].mxu0
      %v998 = vadd.f32 %v913, %v997
      %v999 = vpop.f32.mrb[0].mxu0
      %v1000 = vpop.f32.mrb[0].mxu0
      %v1001 = vadd.f32 %v913, %v1000
      %v1002 = vpop.f32.mrb[0].mxu0
      %1003 = vmatprep.mubr.bf16.mxu0 0
      %1004 = vmatmul.mubr.bf16.gmra.mrb[0].mxu0 %v885
      %v1005 = vpop.f32.mrb[0].mxu0
      %v1006 = vadd.f32 %v913, %v1005
      %v1007 = vpop.f32.mrb[0].mxu0
      %v1008 = vpop.f32.mrb[0].mxu0
      %v1009 = vadd.f32 %v913, %v1008
      %v1010 = vpop.f32.mrb[0].mxu0
      %1011 = vmatprep.mubr.bf16.mxu0 0
      %1012 = vmatmul.mubr.bf16.gmra.mrb[0].mxu0 %v886
      %v1013 = vpop.f32.mrb[0].mxu0
      %v1014 = vadd.f32 %v913, %v1013
      %v1015 = vpop.f32.mrb[0].mxu0
      %v1016 = vpop.f32.mrb[0].mxu0
      %v1017 = vadd.f32 %v913, %v1016
      %v1018 = vpop.f32.mrb[0].mxu0
      %1019 = vmatprep.mubr.bf16.mxu0 0
      %1020 = vmatmul.mubr.bf16.gmra.mrb[0].mxu0 %v887
      %v1021 = vpop.f32.mrb[0].mxu0
      %v1022 = vadd.f32 %v913, %v1021
      %v1023 = vpop.f32.mrb[0].mxu0
      %v1024 = vpop.f32.mrb[0].mxu0
      %v1025 = vadd.f32 %v913, %v1024
      %v1026 = vpop.f32.mrb[0].mxu0
      %1027 = vmatprep.mubr.bf16.mxu0 0
      %1028 = vmatmul.mubr.bf16.gmra.mrb[0].mxu0 %v888
      %v1029 = vpop.f32.mrb[0].mxu0
      %v1030 = vadd.f32 %v913, %v1029
      %v1031 = vpop.f32.mrb[0].mxu0
      %v1032 = vpop.f32.mrb[0].mxu0
      %v1033 = vadd.f32 %v913, %v1032
      %v1034 = vpop.f32.mrb[0].mxu0
      %1035 = vmatprep.mubr.bf16.mxu0 0
      %1036 = vmatmul.mubr.bf16.gmra.mrb[0].mxu0 %v889
      %v1037 = vpop.f32.mrb[0].mxu0
      %v1038 = vadd.f32 %v913, %v1037
      %v1039 = vpop.f32.mrb[0].mxu0
      %v1040 = vpop.f32.mrb[0].mxu0
      %v1041 = vadd.f32 %v913, %v1040
      %v1042 = vpop.f32.mrb[0].mxu0
      %1043 = vmatprep.mubr.bf16.mxu0 0
      %1044 = vmatmul.mubr.bf16.gmra.mrb[0].mxu0 %v890
      %v1045 = vpop.f32.mrb[0].mxu0
      %v1046 = vadd.f32 %v913, %v1045
      %v1047 = vpop.f32.mrb[0].mxu0
      %v1048 = vpop.f32.mrb[0].mxu0
      %v1049 = vadd.f32 %v913, %v1048
      %v1050 = vpop.f32.mrb[0].mxu0
      %1051 = vmatprep.mubr.bf16.mxu0 0
      %1052 = vmatmul.mubr.bf16.gmra.mrb[0].mxu0 %v891
      %v1053 = vpop.f32.mrb[0].mxu0
      %v1054 = vadd.f32 %v913, %v1053
      %v1055 = vpop.f32.mrb[0].mxu0
      %v1056 = vpop.f32.mrb[0].mxu0
      %v1057 = vadd.f32 %v913, %v1056
      %v1058 = vpop.f32.mrb[0].mxu0
      %1059 = vdwg.mxu0
      %v1060 = vmax.f32 %v998, 0.0
      %v1061 = vmax.f32 %v1001, 0.0
      %v1062 = vmax.f32 %v1006, 0.0
      %v1063 = vmax.f32 %v1009, 0.0
      %v1064 = vmax.f32 %v1014, 0.0
      %v1065 = vmax.f32 %v1017, 0.0
      %v1066 = vmax.f32 %v1022, 0.0
      %v1067 = vmax.f32 %v1025, 0.0
      %v1068 = vmax.f32 %v1030, 0.0
      %v1069 = vmax.f32 %v1033, 0.0
      %v1070 = vmax.f32 %v1038, 0.0
      %v1071 = vmax.f32 %v1041, 0.0
      %v1072 = vmax.f32 %v1046, 0.0
      %v1073 = vmax.f32 %v1049, 0.0
      %v1074 = vmax.f32 %v1054, 0.0
      %v1075 = vmax.f32 %v1057, 0.0
      %v1076 = vpack.c.bf16 %v1061, %v1060
      %v1077 = vpack.c.bf16 %v1063, %v1062
      %v1078 = vpack.c.bf16 %v1065, %v1064
      %v1079 = vpack.c.bf16 %v1067, %v1066
      %v1080 = vpack.c.bf16 %v1069, %v1068
      %v1081 = vpack.c.bf16 %v1071, %v1070
      %v1082 = vpack.c.bf16 %v1073, %v1072
      %v1083 = vpack.c.bf16 %v1075, %v1074
      %v1084 = vld [vmem:[%s619] sm:$0xf]
      %v1085 = vld [vmem:[%s619 + $0x4] sm:$0xf]
      %v1086 = vld [vmem:[%s619 + $0x8] sm:$0xf]
      %v1087 = vld [vmem:[%s619 + $0xc] sm:$0xf]
      %v1088 = vld [vmem:[%s619 + $0x10] sm:$0xf]
      %v1089 = vld [vmem:[%s619 + $0x14] sm:$0xf]
      %v1090 = vld [vmem:[%s619 + $0x18] sm:$0xf]
      %v1091 = vld [vmem:[%s619 + $0x1c] sm:$0xf]
      %v1092 = vld [vmem:[%s619 + $0x20] sm:$0xf]
      %v1093 = vld [vmem:[%s619 + $0x24] sm:$0xf]
      %v1094 = vld [vmem:[%s619 + $0x28] sm:$0xf]
      %v1095 = vld [vmem:[%s619 + $0x2c] sm:$0xf]
      %v1096 = vld [vmem:[%s619 + $0x30] sm:$0xf]
      %v1097 = vld [vmem:[%s619 + $0x34] sm:$0xf]
      %v1098 = vld [vmem:[%s619 + $0x38] sm:$0xf]
      %v1099 = vld [vmem:[%s619 + $0x3c] sm:$0xf]
      %v1100 = vld [vmem:[%s622] sm:$0x1]
      %v1102 = vlaneseq
      %v1103 = vshrl.u32 %v1102, 7
      %v1104 = vsub.s32 0, %v1103
      %v1105 = vrot.slane %v1100, %v1104
      %v1123 = vunpack.c.l.b16 %v1084
      %v1124 = vunpack.c.l.b16 %v1085
      %v1125 = vunpack.c.l.b16 %v1086
      %v1126 = vunpack.c.l.b16 %v1087
      %v1127 = vunpack.c.l.b16 %v1088
      %v1128 = vunpack.c.l.b16 %v1089
      %v1129 = vunpack.c.l.b16 %v1090
      %v1130 = vunpack.c.l.b16 %v1091
      %v1131 = vunpack.c.l.b16 %v1092
      %v1132 = vunpack.c.l.b16 %v1093
      %v1133 = vunpack.c.l.b16 %v1094
      %v1134 = vunpack.c.l.b16 %v1095
      %v1135 = vunpack.c.l.b16 %v1096
      %v1136 = vunpack.c.l.b16 %v1097
      %v1137 = vunpack.c.l.b16 %v1098
      %v1138 = vunpack.c.l.b16 %v1099
      %v1139 = vpack.c.b16 %v1124, %v1123
      %v1140 = vpack.c.b16 %v1126, %v1125
      %v1141 = vpack.c.b16 %v1128, %v1127
      %v1142 = vpack.c.b16 %v1130, %v1129
      %v1143 = vpack.c.b16 %v1132, %v1131
      %v1144 = vpack.c.b16 %v1134, %v1133
      %v1145 = vpack.c.b16 %v1136, %v1135
      %v1146 = vpack.c.b16 %v1138, %v1137
      %1155 = vmatprep.subr.bf16.mxu0 0
      %1156 = vmatpush1.bf16.msra.mxu0 %v1139
      %1157 = vmatprep.subr.bf16.mxu0 0
      %1158 = vmatpush1.bf16.msra.mxu0 %v1140
      %1159 = vmatprep.subr.bf16.mxu0 0
      %1160 = vmatpush1.bf16.msra.mxu0 %v1141
      %1161 = vmatprep.subr.bf16.mxu0 0
      %1162 = vmatpush1.bf16.msra.mxu0 %v1142
      %1163 = vmatprep.subr.bf16.mxu0 0
      %1164 = vmatpush1.bf16.msra.mxu0 %v1143
      %1165 = vmatprep.subr.bf16.mxu0 0
      %1166 = vmatpush1.bf16.msra.mxu0 %v1144
      %1167 = vmatprep.subr.bf16.mxu0 0
      %1168 = vmatpush1.bf16.msra.mxu0 %v1145
      %1169 = vmatprep.subr.bf16.mxu0 0
      %1170 = vmatpush1.bf16.msra.mxu0 %v1146
      %1171 = vmatprep.subr.bf16.mxu0 0
      %1172 = vmatpush1.bf16.msra.mxu0 0
      %1173 = vmatprep.subr.bf16.mxu0 0
      %1174 = vmatpush1.bf16.msra.mxu0 0
      %1175 = vmatprep.subr.bf16.mxu0 0
      %1176 = vmatpush1.bf16.msra.mxu0 0
      %1177 = vmatprep.subr.bf16.mxu0 0
      %1178 = vmatpush1.bf16.msra.mxu0 0
      %1179 = vmatprep.subr.bf16.mxu0 0
      %1180 = vmatpush1.bf16.msra.mxu0 0
      %1181 = vmatprep.subr.bf16.mxu0 0
      %1182 = vmatpush1.bf16.msra.mxu0 0
      %1183 = vmatprep.subr.bf16.mxu0 0
      %1184 = vmatpush1.bf16.msra.mxu0 0
      %1185 = vmatprep.subr.bf16.mxu0 0
      %1186 = vmatpush1.bf16.msra.mxu0 0
      %1187 = vmatprep.mubr.bf16.mxu0 0
      %1188 = vmatmul.mubr.bf16.gmra.mrb[0].mxu0 %v1076
      %v1189 = vpop.f32.mrb[0].mxu0
      %v1190 = vadd.f32 %v1105, %v1189
      %v1191 = vpop.f32.mrb[0].mxu0
      %v1192 = vpop.f32.mrb[0].mxu0
      %v1193 = vadd.f32 %v1105, %v1192
      %v1194 = vpop.f32.mrb[0].mxu0
      %1195 = vmatprep.mubr.bf16.mxu0 0
      %1196 = vmatmul.mubr.bf16.gmra.mrb[0].mxu0 %v1077
      %v1197 = vpop.f32.mrb[0].mxu0
      %v1198 = vadd.f32 %v1105, %v1197
      %v1199 = vpop.f32.mrb[0].mxu0
      %v1200 = vpop.f32.mrb[0].mxu0
      %v1201 = vadd.f32 %v1105, %v1200
      %v1202 = vpop.f32.mrb[0].mxu0
      %1203 = vmatprep.mubr.bf16.mxu0 0
      %1204 = vmatmul.mubr.bf16.gmra.mrb[0].mxu0 %v1078
      %v1205 = vpop.f32.mrb[0].mxu0
      %v1206 = vadd.f32 %v1105, %v1205
      %v1207 = vpop.f32.mrb[0].mxu0
      %v1208 = vpop.f32.mrb[0].mxu0
      %v1209 = vadd.f32 %v1105, %v1208
      %v1210 = vpop.f32.mrb[0].mxu0
      %1211 = vmatprep.mubr.bf16.mxu0 0
      %1212 = vmatmul.mubr.bf16.gmra.mrb[0].mxu0 %v1079
      %v1213 = vpop.f32.mrb[0].mxu0
      %v1214 = vadd.f32 %v1105, %v1213
      %v1215 = vpop.f32.mrb[0].mxu0
      %v1216 = vpop.f32.mrb[0].mxu0
      %v1217 = vadd.f32 %v1105, %v1216
      %v1218 = vpop.f32.mrb[0].mxu0
      %1219 = vmatprep.mubr.bf16.mxu0 0
      %1220 = vmatmul.mubr.bf16.gmra.mrb[0].mxu0 %v1080
      %v1221 = vpop.f32.mrb[0].mxu0
      %v1222 = vadd.f32 %v1105, %v1221
      %v1223 = vpop.f32.mrb[0].mxu0
      %v1224 = vpop.f32.mrb[0].mxu0
      %v1225 = vadd.f32 %v1105, %v1224
      %v1226 = vpop.f32.mrb[0].mxu0
      %1227 = vmatprep.mubr.bf16.mxu0 0
      %1228 = vmatmul.mubr.bf16.gmra.mrb[0].mxu0 %v1081
      %v1229 = vpop.f32.mrb[0].mxu0
      %v1230 = vadd.f32 %v1105, %v1229
      %v1231 = vpop.f32.mrb[0].mxu0
      %v1232 = vpop.f32.mrb[0].mxu0
      %v1233 = vadd.f32 %v1105, %v1232
      %v1234 = vpop.f32.mrb[0].mxu0
      %1235 = vmatprep.mubr.bf16.mxu0 0
      %1236 = vmatmul.mubr.bf16.gmra.mrb[0].mxu0 %v1082
      %v1237 = vpop.f32.mrb[0].mxu0
      %v1238 = vadd.f32 %v1105, %v1237
      %v1239 = vpop.f32.mrb[0].mxu0
      %v1240 = vpop.f32.mrb[0].mxu0
      %v1241 = vadd.f32 %v1105, %v1240
      %v1242 = vpop.f32.mrb[0].mxu0
      %1243 = vmatprep.mubr.bf16.mxu0 0
      %1244 = vmatmul.mubr.bf16.gmra.mrb[0].mxu0 %v1083
      %v1245 = vpop.f32.mrb[0].mxu0
      %v1246 = vadd.f32 %v1105, %v1245
      %v1247 = vpop.f32.mrb[0].mxu0
      %v1248 = vpop.f32.mrb[0].mxu0
      %v1249 = vadd.f32 %v1105, %v1248
      %v1250 = vpop.f32.mrb[0].mxu0
      %1251 = vdwg.mxu0
      %v1252 = vmax.f32 %v1190, 0.0
      %v1253 = vmax.f32 %v1193, 0.0
      %v1254 = vmax.f32 %v1198, 0.0
      %v1255 = vmax.f32 %v1201, 0.0
      %v1256 = vmax.f32 %v1206, 0.0
      %v1257 = vmax.f32 %v1209, 0.0
      %v1258 = vmax.f32 %v1214, 0.0
      %v1259 = vmax.f32 %v1217, 0.0
      %v1260 = vmax.f32 %v1222, 0.0
      %v1261 = vmax.f32 %v1225, 0.0
      %v1262 = vmax.f32 %v1230, 0.0
      %v1263 = vmax.f32 %v1233, 0.0
      %v1264 = vmax.f32 %v1238, 0.0
      %v1265 = vmax.f32 %v1241, 0.0
      %v1266 = vmax.f32 %v1246, 0.0
      %v1267 = vmax.f32 %v1249, 0.0
      %v1268 = vld [vmem:[%s601] sm:$0xff]
      %v1269 = vld [vmem:[%s601 + $0x8] sm:$0xff]
      %v1270 = vld [vmem:[%s601 + $0x10] sm:$0xff]
      %v1271 = vld [vmem:[%s601 + $0x18] sm:$0xff]
      %v1272 = vld [vmem:[%s601 + $0x20] sm:$0xff]
      %v1273 = vld [vmem:[%s601 + $0x28] sm:$0xff]
      %v1274 = vld [vmem:[%s601 + $0x30] sm:$0xff]
      %v1275 = vld [vmem:[%s601 + $0x38] sm:$0xff]
      %v1276 = vld [vmem:[%s601 + $0x40] sm:$0xff]
      %v1277 = vld [vmem:[%s601 + $0x48] sm:$0xff]
      %v1278 = vld [vmem:[%s601 + $0x50] sm:$0xff]
      %v1279 = vld [vmem:[%s601 + $0x58] sm:$0xff]
      %v1280 = vld [vmem:[%s601 + $0x60] sm:$0xff]
      %v1281 = vld [vmem:[%s601 + $0x68] sm:$0xff]
      %v1282 = vld [vmem:[%s601 + $0x70] sm:$0xff]
      %v1283 = vld [vmem:[%s601 + $0x78] sm:$0xff]
      %1285 = vset.pattern.permute.xlu0 0
      %1286 = vperm.xlu0 %1285, %v1268
      %v1287 = vpop.permute.xlu0 %1286
      %1290 = vset.pattern.permute.xlu0 0
      %1291 = vperm.xlu0 %1290, %v1269
      %v1292 = vpop.permute.xlu0 %1291
      %1295 = vset.pattern.permute.xlu0 0
      %1296 = vperm.xlu0 %1295, %v1270
      %v1297 = vpop.permute.xlu0 %1296
      %1300 = vset.pattern.permute.xlu0 0
      %1301 = vperm.xlu0 %1300, %v1271
      %v1302 = vpop.permute.xlu0 %1301
      %1305 = vset.pattern.permute.xlu0 0
      %1306 = vperm.xlu0 %1305, %v1272
      %v1307 = vpop.permute.xlu0 %1306
      %1310 = vset.pattern.permute.xlu0 0
      %1311 = vperm.xlu0 %1310, %v1273
      %v1312 = vpop.permute.xlu0 %1311
      %1315 = vset.pattern.permute.xlu0 0
      %1316 = vperm.xlu0 %1315, %v1274
      %v1317 = vpop.permute.xlu0 %1316
      %1320 = vset.pattern.permute.xlu0 0
      %1321 = vperm.xlu0 %1320, %v1275
      %v1322 = vpop.permute.xlu0 %1321
      %1325 = vset.pattern.permute.xlu0 0
      %1326 = vperm.xlu0 %1325, %v1276
      %v1327 = vpop.permute.xlu0 %1326
      %1330 = vset.pattern.permute.xlu0 0
      %1331 = vperm.xlu0 %1330, %v1277
      %v1332 = vpop.permute.xlu0 %1331
      %1335 = vset.pattern.permute.xlu0 0
      %1336 = vperm.xlu0 %1335, %v1278
      %v1337 = vpop.permute.xlu0 %1336
      %1340 = vset.pattern.permute.xlu0 0
      %1341 = vperm.xlu0 %1340, %v1279
      %v1342 = vpop.permute.xlu0 %1341
      %1345 = vset.pattern.permute.xlu0 0
      %1346 = vperm.xlu0 %1345, %v1280
      %v1347 = vpop.permute.xlu0 %1346
      %1350 = vset.pattern.permute.xlu0 0
      %1351 = vperm.xlu0 %1350, %v1281
      %v1352 = vpop.permute.xlu0 %1351
      %1355 = vset.pattern.permute.xlu0 0
      %1356 = vperm.xlu0 %1355, %v1282
      %v1357 = vpop.permute.xlu0 %1356
      %1360 = vset.pattern.permute.xlu0 0
      %1361 = vperm.xlu0 %1360, %v1283
      %v1362 = vpop.permute.xlu0 %1361
      %v1364 = vmul.f32 %v1252, %v1287
      %v1365 = vmul.f32 %v1253, %v1292
      %v1366 = vmul.f32 %v1254, %v1297
      %v1367 = vmul.f32 %v1255, %v1302
      %v1368 = vmul.f32 %v1256, %v1307
      %v1369 = vmul.f32 %v1257, %v1312
      %v1370 = vmul.f32 %v1258, %v1317
      %v1371 = vmul.f32 %v1259, %v1322
      %v1372 = vmul.f32 %v1260, %v1327
      %v1373 = vmul.f32 %v1261, %v1332
      %v1374 = vmul.f32 %v1262, %v1337
      %v1375 = vmul.f32 %v1263, %v1342
      %v1376 = vmul.f32 %v1264, %v1347
      %v1377 = vmul.f32 %v1265, %v1352
      %v1378 = vmul.f32 %v1266, %v1357
      %v1379 = vmul.f32 %v1267, %v1362
      %v1380 = vld [vmem:[#allocation4] sm:$0x1]
      %v1381 = vadd.f32 %v1364, %v1365
      %v1382 = vadd.f32 %v1381, %v1366
      %v1383 = vadd.f32 %v1382, %v1367
      %v1384 = vadd.f32 %v1383, %v1368
      %v1385 = vadd.f32 %v1384, %v1369
      %v1386 = vadd.f32 %v1385, %v1370
      %v1387 = vadd.f32 %v1386, %v1371
      %v1388 = vadd.f32 %v1387, %v1372
      %v1389 = vadd.f32 %v1388, %v1373
      %v1390 = vadd.f32 %v1389, %v1374
      %v1391 = vadd.f32 %v1390, %v1375
      %v1392 = vadd.f32 %v1391, %v1376
      %v1393 = vadd.f32 %v1392, %v1377
      %v1394 = vadd.f32 %v1393, %v1378
      %v1395 = vadd.f32 %v1394, %v1379
      %v1396 = vrot.slane %v1395, 4
      %v1397 = vadd.f32 %v1395, %v1396
      %v1398 = vrot.slane %v1397, 2
      %v1399 = vadd.f32 %v1397, %v1398
      %v1400 = vrot.slane %v1399, 1
      %v1401 = vadd.f32 %v1399, %v1400
      %v1402 = vadd.f32 %v1380, %v1401
      %1403 = vst [vmem:[#allocation4] sm:$0x1] %v1402
      %v1404 = vld [vmem:[#allocation4 + $0x1] sm:$0x1]
      %v1405 = vmul.f32 %v1364, %v1252
      %v1406 = vmul.f32 %v1365, %v1253
      %v1407 = vmul.f32 %v1366, %v1254
      %v1408 = vmul.f32 %v1367, %v1255
      %v1409 = vmul.f32 %v1368, %v1256
      %v1410 = vmul.f32 %v1369, %v1257
      %v1411 = vmul.f32 %v1370, %v1258
      %v1412 = vmul.f32 %v1371, %v1259
      %v1413 = vmul.f32 %v1372, %v1260
      %v1414 = vmul.f32 %v1373, %v1261
      %v1415 = vmul.f32 %v1374, %v1262
      %v1416 = vmul.f32 %v1375, %v1263
      %v1417 = vmul.f32 %v1376, %v1264
      %v1418 = vmul.f32 %v1377, %v1265
      %v1419 = vmul.f32 %v1378, %v1266
      %v1420 = vmul.f32 %v1379, %v1267
      %v1421 = vadd.f32 %v1405, %v1406
      %v1422 = vadd.f32 %v1421, %v1407
      %v1423 = vadd.f32 %v1422, %v1408
      %v1424 = vadd.f32 %v1423, %v1409
      %v1425 = vadd.f32 %v1424, %v1410
      %v1426 = vadd.f32 %v1425, %v1411
      %v1427 = vadd.f32 %v1426, %v1412
      %v1428 = vadd.f32 %v1427, %v1413
      %v1429 = vadd.f32 %v1428, %v1414
      %v1430 = vadd.f32 %v1429, %v1415
      %v1431 = vadd.f32 %v1430, %v1416
      %v1432 = vadd.f32 %v1431, %v1417
      %v1433 = vadd.f32 %v1432, %v1418
      %v1434 = vadd.f32 %v1433, %v1419
      %v1435 = vadd.f32 %v1434, %v1420
      %v1436 = vrot.slane %v1435, 4
      %v1437 = vadd.f32 %v1435, %v1436
      %v1438 = vrot.slane %v1437, 2
      %v1439 = vadd.f32 %v1437, %v1438
      %v1440 = vrot.slane %v1439, 1
      %v1441 = vadd.f32 %v1439, %v1440
      %v1442 = vadd.f32 %v1404, %v1441
      %1443 = vst [vmem:[#allocation4 + $0x1] sm:$0x1] %v1442
      %v1444 = vpack.c.bf16 %v1253, %v1252
      %v1445 = vpack.c.bf16 %v1255, %v1254
      %v1446 = vpack.c.bf16 %v1257, %v1256
      %v1447 = vpack.c.bf16 %v1259, %v1258
      %v1448 = vpack.c.bf16 %v1261, %v1260
      %v1449 = vpack.c.bf16 %v1263, %v1262
      %v1450 = vpack.c.bf16 %v1265, %v1264
      %v1451 = vpack.c.bf16 %v1267, %v1266
      %s1452 = smul.u32 %s30, 8
      %s1453 = scalar_lea.vmem [#allocation5], %s1452
      %v1454 = vld [vmem:[%s1453] sm:$0xff]
      %v1455 = vld [vmem:[%s606] sm:$0xf]
      %1456 = vmatprep.subr.bf16.mxu0 0
      %1457 = vmatpush1.bf16.msra.mxu0 %v1444
      %1458 = vmatprep.subr.bf16.mxu0 0
      %1459 = vmatpush1.bf16.msra.mxu0 %v1445
      %1460 = vmatprep.subr.bf16.mxu0 0
      %1461 = vmatpush1.bf16.msra.mxu0 %v1446
      %1462 = vmatprep.subr.bf16.mxu0 0
      %1463 = vmatpush1.bf16.msra.mxu0 %v1447
      %1464 = vmatprep.subr.bf16.mxu0 0
      %1465 = vmatpush1.bf16.msra.mxu0 %v1448
      %1466 = vmatprep.subr.bf16.mxu0 0
      %1467 = vmatpush1.bf16.msra.mxu0 %v1449
      %1468 = vmatprep.subr.bf16.mxu0 0
      %1469 = vmatpush1.bf16.msra.mxu0 %v1450
      %1470 = vmatprep.subr.bf16.mxu0 0
      %1471 = vmatpush1.bf16.msra.mxu0 %v1451
      %1472 = vmatprep.subr.bf16.mxu0 0
      %1473 = vmatpush1.bf16.msra.mxu0 0
      %1474 = vmatprep.subr.bf16.mxu0 0
      %1475 = vmatpush1.bf16.msra.mxu0 0
      %1476 = vmatprep.subr.bf16.mxu0 0
      %1477 = vmatpush1.bf16.msra.mxu0 0
      %1478 = vmatprep.subr.bf16.mxu0 0
      %1479 = vmatpush1.bf16.msra.mxu0 0
      %1480 = vmatprep.subr.bf16.mxu0 0
      %1481 = vmatpush1.bf16.msra.mxu0 0
      %1482 = vmatprep.subr.bf16.mxu0 0
      %1483 = vmatpush1.bf16.msra.mxu0 0
      %1484 = vmatprep.subr.bf16.mxu0 0
      %1485 = vmatpush1.bf16.msra.mxu0 0
      %1486 = vmatprep.subr.bf16.mxu0 0
      %1487 = vmatpush1.bf16.msra.mxu0 0
      %1488 = vmatprep.mubr.bf16.mxu0 0
      %1489 = vmatmul.mubr.bf16.gmra.mrb[0].mxu0 %v1455
      %v1490 = vpop.f32.mrb[0].mxu0
      %v1491 = vadd.f32 0.0, %v1490
      %v1492 = vpop.f32.mrb[0].mxu0
      %v1493 = vpop.f32.mrb[0].mxu0
      %v1494 = vpop.f32.mrb[0].mxu0
      %1495 = vdwg.mxu0
      %v1496 = vadd.f32 %v1454, %v1491
      %1497 = vst [vmem:[%s1453] sm:$0xff] %v1496
      %s1498 = smul.u32 %s31, 128
      %s1499 = scalar_lea.vmem [#allocation3], %s1498
      %1500 = vst [vmem:[%s1499] sm:$0xff] %v1252
      %1501 = vst [vmem:[%s1499 + $0x8] sm:$0xff] %v1253
      %1502 = vst [vmem:[%s1499 + $0x10] sm:$0xff] %v1254
      %1503 = vst [vmem:[%s1499 + $0x18] sm:$0xff] %v1255
      %1504 = vst [vmem:[%s1499 + $0x20] sm:$0xff] %v1256
      %1505 = vst [vmem:[%s1499 + $0x28] sm:$0xff] %v1257
      %1506 = vst [vmem:[%s1499 + $0x30] sm:$0xff] %v1258
      %1507 = vst [vmem:[%s1499 + $0x38] sm:$0xff] %v1259
      %1508 = vst [vmem:[%s1499 + $0x40] sm:$0xff] %v1260
      %1509 = vst [vmem:[%s1499 + $0x48] sm:$0xff] %v1261
      %1510 = vst [vmem:[%s1499 + $0x50] sm:$0xff] %v1262
      %1511 = vst [vmem:[%s1499 + $0x58] sm:$0xff] %v1263
      %1512 = vst [vmem:[%s1499 + $0x60] sm:$0xff] %v1264
      %1513 = vst [vmem:[%s1499 + $0x68] sm:$0xff] %v1265
      %1514 = vst [vmem:[%s1499 + $0x70] sm:$0xff] %v1266
      %1515 = vst [vmem:[%s1499 + $0x78] sm:$0xff] %v1267
      // Predicated region
      $region89: #{simclr_graph_cl_forward.1} parent=79 // pred_check
        %p1516 = pneg %p631
      $region90: #{simclr_graph_cl_forward.1} parent=79 // pred_check_branch
        %1518 = sbr.rel (%p1516) target = $region92
      $region91: #{simclr_graph_cl_forward.1} parent=79 // pred_region
        %v1519 = vld [vmem:[#allocation4] sm:$0x1]
        %v1520 = vmul.f32 %v1519, 0.0625
        %v1521 = vld [vmem:[#allocation4 + $0x1] sm:$0x1]
        %v1522 = vmul.f32 %v1521, 0.0625
        %v1523 = vmul.f32 %v1520, %v1520
        %v1524 = vsub.f32 %v1522, %v1523
        %v1525 = vmax.f32 %v1524, 0.0
        %v1526 = vld [vmem:[%s625] sm:$0x1]
        %v1527 = vadd.f32 %v1525, 1e-05
        %v1528 = vrsqrt.pop %v1527
        %v1529 = vmul.f32 %v1526, %v1528
        %v1530 = vld [vmem:[%s628] sm:$0x1]
        %v1531 = vmul.f32 %v1520, %v1529
        %v1532 = vsub.f32 %v1530, %v1531
        %v1533 = vld [vmem:[%s1453] sm:$0xff]
        %v1535 = vlaneseq
        %v1536 = vshrl.u32 %v1535, 7
        %v1537 = vsub.s32 0, %v1536
        %v1538 = vrot.slane %v1529, %v1537
        %v1540 = vmul.f32 %v1533, %v1538
        %v1541 = vld [vmem:[%s4] sm:$0xff]
        %1543 = vset.pattern.permute.xlu0 0
        %1544 = vperm.xlu0 %1543, %v1541
        %v1545 = vpop.permute.xlu0 %1544
        %v1548 = vlaneseq
        %v1549 = vshrl.u32 %v1548, 7
        %v1550 = vsub.s32 0, %v1549
        %v1551 = vrot.slane %v1532, %v1550
        %v1553 = vmul.f32 %v1545, %v1551
        %v1554 = vadd.f32 %v1540, %v1553
        %1555 = vst [vmem:[%s1453] sm:$0xff] %v1554
        %p1556 = scmp.lt.s32.totalorder %s30, 2
        // Predicated region
        $region93: #{simclr_graph_cl_forward.1} parent=91 // pred_check
          %p1557 = pneg %p1556
        $region94: #{simclr_graph_cl_forward.1} parent=91 // pred_check_branch
          %1559 = sbr.rel (%p1557) target = $region96
        $region95: #{simclr_graph_cl_forward.1} parent=91 // pred_region
          %v1560 = vld [vmem:[#allocation3] sm:$0xff]
          %v1561 = vld [vmem:[#allocation3 + $0x8] sm:$0xff]
          %v1562 = vld [vmem:[#allocation3 + $0x10] sm:$0xff]
          %v1563 = vld [vmem:[#allocation3 + $0x18] sm:$0xff]
          %v1564 = vld [vmem:[#allocation3 + $0x20] sm:$0xff]
          %v1565 = vld [vmem:[#allocation3 + $0x28] sm:$0xff]
          %v1566 = vld [vmem:[#allocation3 + $0x30] sm:$0xff]
          %v1567 = vld [vmem:[#allocation3 + $0x38] sm:$0xff]
          %v1568 = vld [vmem:[#allocation3 + $0x40] sm:$0xff]
          %v1569 = vld [vmem:[#allocation3 + $0x48] sm:$0xff]
          %v1570 = vld [vmem:[#allocation3 + $0x50] sm:$0xff]
          %v1571 = vld [vmem:[#allocation3 + $0x58] sm:$0xff]
          %v1572 = vld [vmem:[#allocation3 + $0x60] sm:$0xff]
          %v1573 = vld [vmem:[#allocation3 + $0x68] sm:$0xff]
          %v1574 = vld [vmem:[#allocation3 + $0x70] sm:$0xff]
          %v1575 = vld [vmem:[#allocation3 + $0x78] sm:$0xff]
          %v1576 = vmul.f32 %v1560, %v1538
          %v1577 = vmul.f32 %v1561, %v1538
          %v1578 = vmul.f32 %v1562, %v1538
          %v1579 = vmul.f32 %v1563, %v1538
          %v1580 = vmul.f32 %v1564, %v1538
          %v1581 = vmul.f32 %v1565, %v1538
          %v1582 = vmul.f32 %v1566, %v1538
          %v1583 = vmul.f32 %v1567, %v1538
          %v1584 = vmul.f32 %v1568, %v1538
          %v1585 = vmul.f32 %v1569, %v1538
          %v1586 = vmul.f32 %v1570, %v1538
          %v1587 = vmul.f32 %v1571, %v1538
          %v1588 = vmul.f32 %v1572, %v1538
          %v1589 = vmul.f32 %v1573, %v1538
          %v1590 = vmul.f32 %v1574, %v1538
          %v1591 = vmul.f32 %v1575, %v1538
          %v1592 = vadd.f32 %v1576, %v1551
          %v1593 = vadd.f32 %v1577, %v1551
          %v1594 = vadd.f32 %v1578, %v1551
          %v1595 = vadd.f32 %v1579, %v1551
          %v1596 = vadd.f32 %v1580, %v1551
          %v1597 = vadd.f32 %v1581, %v1551
          %v1598 = vadd.f32 %v1582, %v1551
          %v1599 = vadd.f32 %v1583, %v1551
          %v1600 = vadd.f32 %v1584, %v1551
          %v1601 = vadd.f32 %v1585, %v1551
          %v1602 = vadd.f32 %v1586, %v1551
          %v1603 = vadd.f32 %v1587, %v1551
          %v1604 = vadd.f32 %v1588, %v1551
          %v1605 = vadd.f32 %v1589, %v1551
          %v1606 = vadd.f32 %v1590, %v1551
          %v1607 = vadd.f32 %v1591, %v1551
          %v1608 = vpack.c.bf16 %v1593, %v1592
          %v1609 = vpack.c.bf16 %v1595, %v1594
          %v1610 = vpack.c.bf16 %v1597, %v1596
          %v1611 = vpack.c.bf16 %v1599, %v1598
          %v1612 = vpack.c.bf16 %v1601, %v1600
          %v1613 = vpack.c.bf16 %v1603, %v1602
          %v1614 = vpack.c.bf16 %v1605, %v1604
          %v1615 = vpack.c.bf16 %v1607, %v1606
          %1616 = vst [vmem:[#allocation2] sm:$0xff] %v1608
          %1617 = vst [vmem:[#allocation2 + $0x8] sm:$0xff] %v1609
          %1618 = vst [vmem:[#allocation2 + $0x10] sm:$0xff] %v1610
          %1619 = vst [vmem:[#allocation2 + $0x18] sm:$0xff] %v1611
          %1620 = vst [vmem:[#allocation2 + $0x20] sm:$0xff] %v1612
          %1621 = vst [vmem:[#allocation2 + $0x28] sm:$0xff] %v1613
          %1622 = vst [vmem:[#allocation2 + $0x30] sm:$0xff] %v1614
          %1623 = vst [vmem:[#allocation2 + $0x38] sm:$0xff] %v1615
        $region96: #{simclr_graph_cl_forward.1} parent=91 // pred_fallthru
          _
        %p1624 = scmp.eq.s32.totalorder %s30, 2
        // Predicated region
        $region97: #{simclr_graph_cl_forward.1} parent=91 // pred_check
          %p1625 = pneg %p1624
        $region98: #{simclr_graph_cl_forward.1} parent=91 // pred_check_branch
          %1627 = sbr.rel (%p1625) target = $region100
        $region99: #{simclr_graph_cl_forward.1} parent=91 // pred_region
          %v1628 = vld [vmem:[#allocation5] sm:$0xff]
          %s1629 = scalar_lea.vmem [#allocation5], 8
          %v1630 = vld [vmem:[%s1629] sm:$0xff]
          %s1631 = scalar_lea.vmem [#allocation5], 16
          %v1632 = vld [vmem:[%s1631] sm:$0xff]
          %v1633 = vpack.c.bf16 %v1628, %v1628
          %v1634 = vpack.c.bf16 %v1630, %v1630
          %v1635 = vpack.c.bf16 %v1632, %v1632
          %v1636 = vld [vmem:[%s11] sm:$0xf]
          %v1637 = vld [vmem:[%s11 + $0x4] sm:$0xf]
          %v1638 = vld [vmem:[%s11 + $0x8] sm:$0xf]
          %v1639 = vld [vmem:[%s11 + $0xc] sm:$0xf]
          %v1640 = vld [vmem:[%s11 + $0x10] sm:$0xf]
          %v1641 = vld [vmem:[%s11 + $0x14] sm:$0xf]
          %v1642 = vld [vmem:[%s11 + $0x18] sm:$0xf]
          %v1643 = vld [vmem:[%s11 + $0x1c] sm:$0xf]
          %v1644 = vld [vmem:[%s11 + $0x20] sm:$0xf]
          %v1645 = vld [vmem:[%s11 + $0x24] sm:$0xf]
          %v1646 = vld [vmem:[%s11 + $0x28] sm:$0xf]
          %v1647 = vld [vmem:[%s11 + $0x2c] sm:$0xf]
          %v1648 = vld [vmem:[%s11 + $0x30] sm:$0xf]
          %v1649 = vld [vmem:[%s11 + $0x34] sm:$0xf]
          %v1650 = vld [vmem:[%s11 + $0x38] sm:$0xf]
          %v1651 = vld [vmem:[%s11 + $0x3c] sm:$0xf]
          %v1652 = vld [vmem:[%s11 + $0x40] sm:$0xf]
          %v1653 = vld [vmem:[%s11 + $0x44] sm:$0xf]
          %v1654 = vld [vmem:[%s11 + $0x48] sm:$0xf]
          %v1655 = vld [vmem:[%s11 + $0x4c] sm:$0xf]
          %v1656 = vld [vmem:[%s11 + $0x50] sm:$0xf]
          %v1657 = vld [vmem:[%s11 + $0x54] sm:$0xf]
          %v1658 = vld [vmem:[%s11 + $0x58] sm:$0xf]
          %v1659 = vld [vmem:[%s11 + $0x5c] sm:$0xf]
          %v1660 = vld [vmem:[%s11 + $0x60] sm:$0xf]
          %v1661 = vld [vmem:[%s11 + $0x64] sm:$0xf]
          %v1662 = vld [vmem:[%s11 + $0x68] sm:$0xf]
          %v1663 = vld [vmem:[%s11 + $0x6c] sm:$0xf]
          %v1664 = vld [vmem:[%s11 + $0x70] sm:$0xf]
          %v1665 = vld [vmem:[%s11 + $0x74] sm:$0xf]
          %v1666 = vld [vmem:[%s11 + $0x78] sm:$0xf]
          %v1667 = vld [vmem:[%s11 + $0x7c] sm:$0xf]
          %v1668 = vld [vmem:[%s11 + $0x80] sm:$0xf]
          %v1669 = vld [vmem:[%s11 + $0x84] sm:$0xf]
          %v1670 = vld [vmem:[%s11 + $0x88] sm:$0xf]
          %v1671 = vld [vmem:[%s11 + $0x8c] sm:$0xf]
          %v1672 = vld [vmem:[%s11 + $0x90] sm:$0xf]
          %v1673 = vld [vmem:[%s11 + $0x94] sm:$0xf]
          %v1674 = vld [vmem:[%s11 + $0x98] sm:$0xf]
          %v1675 = vld [vmem:[%s11 + $0x9c] sm:$0xf]
          %v1676 = vld [vmem:[%s11 + $0xa0] sm:$0xf]
          %v1677 = vld [vmem:[%s11 + $0xa4] sm:$0xf]
          %v1678 = vld [vmem:[%s11 + $0xa8] sm:$0xf]
          %v1679 = vld [vmem:[%s11 + $0xac] sm:$0xf]
          %v1680 = vld [vmem:[%s11 + $0xb0] sm:$0xf]
          %v1681 = vld [vmem:[%s11 + $0xb4] sm:$0xf]
          %v1682 = vld [vmem:[%s11 + $0xb8] sm:$0xf]
          %v1683 = vld [vmem:[%s11 + $0xbc] sm:$0xf]
          %v1684 = vld [vmem:[%s12] sm:$0x1]
          %v1686 = vlaneseq
          %v1687 = vshrl.u32 %v1686, 7
          %v1688 = vsub.s32 0, %v1687
          %v1689 = vrot.slane %v1684, %v1688
          %v1739 = vunpack.c.l.b16 %v1636
          %v1740 = vunpack.c.l.b16 %v1637
          %v1741 = vunpack.c.l.b16 %v1638
          %v1742 = vunpack.c.l.b16 %v1639
          %v1743 = vunpack.c.l.b16 %v1640
          %v1744 = vunpack.c.l.b16 %v1641
          %v1745 = vunpack.c.l.b16 %v1642
          %v1746 = vunpack.c.l.b16 %v1643
          %v1747 = vunpack.c.l.b16 %v1644
          %v1748 = vunpack.c.l.b16 %v1645
          %v1749 = vunpack.c.l.b16 %v1646
          %v1750 = vunpack.c.l.b16 %v1647
          %v1751 = vunpack.c.l.b16 %v1648
          %v1752 = vunpack.c.l.b16 %v1649
          %v1753 = vunpack.c.l.b16 %v1650
          %v1754 = vunpack.c.l.b16 %v1651
          %v1755 = vunpack.c.l.b16 %v1652
          %v1756 = vunpack.c.l.b16 %v1653
          %v1757 = vunpack.c.l.b16 %v1654
          %v1758 = vunpack.c.l.b16 %v1655
          %v1759 = vunpack.c.l.b16 %v1656
          %v1760 = vunpack.c.l.b16 %v1657
          %v1761 = vunpack.c.l.b16 %v1658
          %v1762 = vunpack.c.l.b16 %v1659
          %v1763 = vunpack.c.l.b16 %v1660
          %v1764 = vunpack.c.l.b16 %v1661
          %v1765 = vunpack.c.l.b16 %v1662
          %v1766 = vunpack.c.l.b16 %v1663
          %v1767 = vunpack.c.l.b16 %v1664
          %v1768 = vunpack.c.l.b16 %v1665
          %v1769 = vunpack.c.l.b16 %v1666
          %v1770 = vunpack.c.l.b16 %v1667
          %v1771 = vunpack.c.l.b16 %v1668
          %v1772 = vunpack.c.l.b16 %v1669
          %v1773 = vunpack.c.l.b16 %v1670
          %v1774 = vunpack.c.l.b16 %v1671
          %v1775 = vunpack.c.l.b16 %v1672
          %v1776 = vunpack.c.l.b16 %v1673
          %v1777 = vunpack.c.l.b16 %v1674
          %v1778 = vunpack.c.l.b16 %v1675
          %v1779 = vunpack.c.l.b16 %v1676
          %v1780 = vunpack.c.l.b16 %v1677
          %v1781 = vunpack.c.l.b16 %v1678
          %v1782 = vunpack.c.l.b16 %v1679
          %v1783 = vunpack.c.l.b16 %v1680
          %v1784 = vunpack.c.l.b16 %v1681
          %v1785 = vunpack.c.l.b16 %v1682
          %v1786 = vunpack.c.l.b16 %v1683
          %v1787 = vpack.c.b16 %v1740, %v1739
          %v1788 = vpack.c.b16 %v1742, %v1741
          %v1789 = vpack.c.b16 %v1744, %v1743
          %v1790 = vpack.c.b16 %v1746, %v1745
          %v1791 = vpack.c.b16 %v1748, %v1747
          %v1792 = vpack.c.b16 %v1750, %v1749
          %v1793 = vpack.c.b16 %v1752, %v1751
          %v1794 = vpack.c.b16 %v1754, %v1753
          %v1795 = vpack.c.b16 %v1756, %v1755
          %v1796 = vpack.c.b16 %v1758, %v1757
          %v1797 = vpack.c.b16 %v1760, %v1759
          %v1798 = vpack.c.b16 %v1762, %v1761
          %v1799 = vpack.c.b16 %v1764, %v1763
          %v1800 = vpack.c.b16 %v1766, %v1765
          %v1801 = vpack.c.b16 %v1768, %v1767
          %v1802 = vpack.c.b16 %v1770, %v1769
          %v1803 = vpack.c.b16 %v1772, %v1771
          %v1804 = vpack.c.b16 %v1774, %v1773
          %v1805 = vpack.c.b16 %v1776, %v1775
          %v1806 = vpack.c.b16 %v1778, %v1777
          %v1807 = vpack.c.b16 %v1780, %v1779
          %v1808 = vpack.c.b16 %v1782, %v1781
          %v1809 = vpack.c.b16 %v1784, %v1783
          %v1810 = vpack.c.b16 %v1786, %v1785
          %1835 = vmatprep.subr.bf16.mxu0 0
          %1836 = vmatpush1.bf16.msra.mxu0 %v1787
          %1837 = vmatprep.subr.bf16.mxu0 0
          %1838 = vmatpush1.bf16.msra.mxu0 %v1788
          %1839 = vmatprep.subr.bf16.mxu0 0
          %1840 = vmatpush1.bf16.msra.mxu0 %v1789
          %1841 = vmatprep.subr.bf16.mxu0 0
          %1842 = vmatpush1.bf16.msra.mxu0 %v1790
          %1843 = vmatprep.subr.bf16.mxu0 0
          %1844 = vmatpush1.bf16.msra.mxu0 %v1791
          %1845 = vmatprep.subr.bf16.mxu0 0
          %1846 = vmatpush1.bf16.msra.mxu0 %v1792
          %1847 = vmatprep.subr.bf16.mxu0 0
          %1848 = vmatpush1.bf16.msra.mxu0 %v1793
          %1849 = vmatprep.subr.bf16.mxu0 0
          %1850 = vmatpush1.bf16.msra.mxu0 %v1794
          %1851 = vmatprep.subr.bf16.mxu0 0
          %1852 = vmatpush1.bf16.msra.mxu0 %v1795
          %1853 = vmatprep.subr.bf16.mxu0 0
          %1854 = vmatpush1.bf16.msra.mxu0 %v1796
          %1855 = vmatprep.subr.bf16.mxu0 0
          %1856 = vmatpush1.bf16.msra.mxu0 %v1797
          %1857 = vmatprep.subr.bf16.mxu0 0
          %1858 = vmatpush1.bf16.msra.mxu0 %v1798
          %1859 = vmatprep.subr.bf16.mxu0 0
          %1860 = vmatpush1.bf16.msra.mxu0 %v1799
          %1861 = vmatprep.subr.bf16.mxu0 0
          %1862 = vmatpush1.bf16.msra.mxu0 %v1800
          %1863 = vmatprep.subr.bf16.mxu0 0
          %1864 = vmatpush1.bf16.msra.mxu0 %v1801
          %1865 = vmatprep.subr.bf16.mxu0 0
          %1866 = vmatpush1.bf16.msra.mxu0 %v1802
          %1867 = vmatprep.mubr.bf16.mxu0 %v1634
          %1868 = vmatmul.mubr.bf16.gmra.mrb[0].mxu0 %v1633
          %v1869 = vpop.f32.mrb[0].mxu0
          %v1870 = vadd.f32 %v1689, %v1869
          %v1871 = vpop.f32.mrb[0].mxu0
          %v1872 = vpop.f32.mrb[0].mxu0
          %v1873 = vpop.f32.mrb[0].mxu0
          %1874 = vdwg.mxu0
          %1875 = vmatprep.subr.bf16.mxu0 0
          %1876 = vmatpush1.bf16.msra.mxu0 %v1803
          %1877 = vmatprep.subr.bf16.mxu0 0
          %1878 = vmatpush1.bf16.msra.mxu0 %v1804
          %1879 = vmatprep.subr.bf16.mxu0 0
          %1880 = vmatpush1.bf16.msra.mxu0 %v1805
          %1881 = vmatprep.subr.bf16.mxu0 0
          %1882 = vmatpush1.bf16.msra.mxu0 %v1806
          %1883 = vmatprep.subr.bf16.mxu0 0
          %1884 = vmatpush1.bf16.msra.mxu0 %v1807
          %1885 = vmatprep.subr.bf16.mxu0 0
          %1886 = vmatpush1.bf16.msra.mxu0 %v1808
          %1887 = vmatprep.subr.bf16.mxu0 0
          %1888 = vmatpush1.bf16.msra.mxu0 %v1809
          %1889 = vmatprep.subr.bf16.mxu0 0
          %1890 = vmatpush1.bf16.msra.mxu0 %v1810
          %1891 = vmatprep.subr.bf16.mxu0 0
          %1892 = vmatpush1.bf16.msra.mxu0 0
          %1893 = vmatprep.subr.bf16.mxu0 0
          %1894 = vmatpush1.bf16.msra.mxu0 0
          %1895 = vmatprep.subr.bf16.mxu0 0
          %1896 = vmatpush1.bf16.msra.mxu0 0
          %1897 = vmatprep.subr.bf16.mxu0 0
          %1898 = vmatpush1.bf16.msra.mxu0 0
          %1899 = vmatprep.subr.bf16.mxu0 0
          %1900 = vmatpush1.bf16.msra.mxu0 0
          %1901 = vmatprep.subr.bf16.mxu0 0
          %1902 = vmatpush1.bf16.msra.mxu0 0
          %1903 = vmatprep.subr.bf16.mxu0 0
          %1904 = vmatpush1.bf16.msra.mxu0 0
          %1905 = vmatprep.subr.bf16.mxu0 0
          %1906 = vmatpush1.bf16.msra.mxu0 0
          %1907 = vmatprep.mubr.bf16.mxu0 0
          %1908 = vmatmul.mubr.bf16.gmra.mrb[0].mxu0 %v1635
          %v1909 = vpop.f32.mrb[0].mxu0
          %v1910 = vadd.f32 %v1870, %v1909
          %v1911 = vpop.f32.mrb[0].mxu0
          %v1912 = vpop.f32.mrb[0].mxu0
          %v1913 = vpop.f32.mrb[0].mxu0
          %1914 = vdwg.mxu0
          %v1915 = vmax.f32 %v1910, 0.0
          %v1916 = vpack.c.bf16 %v1915, %v1915
          %v1917 = vld [vmem:[%s13] sm:$0xf]
          %v1918 = vld [vmem:[%s13 + $0x4] sm:$0xf]
          %v1919 = vld [vmem:[%s13 + $0x8] sm:$0xf]
          %v1920 = vld [vmem:[%s13 + $0xc] sm:$0xf]
          %v1921 = vld [vmem:[%s13 + $0x10] sm:$0xf]
          %v1922 = vld [vmem:[%s13 + $0x14] sm:$0xf]
          %v1923 = vld [vmem:[%s13 + $0x18] sm:$0xf]
          %v1924 = vld [vmem:[%s13 + $0x1c] sm:$0xf]
          %v1925 = vld [vmem:[%s13 + $0x20] sm:$0xf]
          %v1926 = vld [vmem:[%s13 + $0x24] sm:$0xf]
          %v1927 = vld [vmem:[%s13 + $0x28] sm:$0xf]
          %v1928 = vld [vmem:[%s13 + $0x2c] sm:$0xf]
          %v1929 = vld [vmem:[%s13 + $0x30] sm:$0xf]
          %v1930 = vld [vmem:[%s13 + $0x34] sm:$0xf]
          %v1931 = vld [vmem:[%s13 + $0x38] sm:$0xf]
          %v1932 = vld [vmem:[%s13 + $0x3c] sm:$0xf]
          %v1933 = vld [vmem:[%s14] sm:$0x1]
          %v1935 = vlaneseq
          %v1936 = vshrl.u32 %v1935, 7
          %v1937 = vsub.s32 0, %v1936
          %v1938 = vrot.slane %v1933, %v1937
          %v1956 = vunpack.c.l.b16 %v1917
          %v1957 = vunpack.c.l.b16 %v1918
          %v1958 = vunpack.c.l.b16 %v1919
          %v1959 = vunpack.c.l.b16 %v1920
          %v1960 = vunpack.c.l.b16 %v1921
          %v1961 = vunpack.c.l.b16 %v1922
          %v1962 = vunpack.c.l.b16 %v1923
          %v1963 = vunpack.c.l.b16 %v1924
          %v1964 = vunpack.c.l.b16 %v1925
          %v1965 = vunpack.c.l.b16 %v1926
          %v1966 = vunpack.c.l.b16 %v1927
          %v1967 = vunpack.c.l.b16 %v1928
          %v1968 = vunpack.c.l.b16 %v1929
          %v1969 = vunpack.c.l.b16 %v1930
          %v1970 = vunpack.c.l.b16 %v1931
          %v1971 = vunpack.c.l.b16 %v1932
          %v1972 = vpack.c.b16 %v1957, %v1956
          %v1973 = vpack.c.b16 %v1959, %v1958
          %v1974 = vpack.c.b16 %v1961, %v1960
          %v1975 = vpack.c.b16 %v1963, %v1962
          %v1976 = vpack.c.b16 %v1965, %v1964
          %v1977 = vpack.c.b16 %v1967, %v1966
          %v1978 = vpack.c.b16 %v1969, %v1968
          %v1979 = vpack.c.b16 %v1971, %v1970
          %1988 = vmatprep.subr.bf16.mxu0 0
          %1989 = vmatpush1.bf16.msra.mxu0 %v1972
          %1990 = vmatprep.subr.bf16.mxu0 0
          %1991 = vmatpush1.bf16.msra.mxu0 %v1973
          %1992 = vmatprep.subr.bf16.mxu0 0
          %1993 = vmatpush1.bf16.msra.mxu0 %v1974
          %1994 = vmatprep.subr.bf16.mxu0 0
          %1995 = vmatpush1.bf16.msra.mxu0 %v1975
          %1996 = vmatprep.subr.bf16.mxu0 0
          %1997 = vmatpush1.bf16.msra.mxu0 %v1976
          %1998 = vmatprep.subr.bf16.mxu0 0
          %1999 = vmatpush1.bf16.msra.mxu0 %v1977
          %2000 = vmatprep.subr.bf16.mxu0 0
          %2001 = vmatpush1.bf16.msra.mxu0 %v1978
          %2002 = vmatprep.subr.bf16.mxu0 0
          %2003 = vmatpush1.bf16.msra.mxu0 %v1979
          %2004 = vmatprep.subr.bf16.mxu0 0
          %2005 = vmatpush1.bf16.msra.mxu0 0
          %2006 = vmatprep.subr.bf16.mxu0 0
          %2007 = vmatpush1.bf16.msra.mxu0 0
          %2008 = vmatprep.subr.bf16.mxu0 0
          %2009 = vmatpush1.bf16.msra.mxu0 0
          %2010 = vmatprep.subr.bf16.mxu0 0
          %2011 = vmatpush1.bf16.msra.mxu0 0
          %2012 = vmatprep.subr.bf16.mxu0 0
          %2013 = vmatpush1.bf16.msra.mxu0 0
          %2014 = vmatprep.subr.bf16.mxu0 0
          %2015 = vmatpush1.bf16.msra.mxu0 0
          %2016 = vmatprep.subr.bf16.mxu0 0
          %2017 = vmatpush1.bf16.msra.mxu0 0
          %2018 = vmatprep.subr.bf16.mxu0 0
          %2019 = vmatpush1.bf16.msra.mxu0 0
          %2020 = vmatprep.mubr.bf16.mxu0 0
          %2021 = vmatmul.mubr.bf16.gmra.mrb[0].mxu0 %v1916
          %v2022 = vpop.f32.mrb[0].mxu0
          %v2023 = vadd.f32 %v1938, %v2022
          %v2024 = vpop.f32.mrb[0].mxu0
          %v2025 = vpop.f32.mrb[0].mxu0
          %v2026 = vpop.f32.mrb[0].mxu0
          %2027 = vdwg.mxu0
          %2028 = vst [vmem:[%s15] sm:$0xff] %v2023
        $region100: #{simclr_graph_cl_forward.1} parent=91 // pred_fallthru
          _
      $region92: #{simclr_graph_cl_forward.1} parent=79 // pred_fallthru
        _
      // Predicated region
      $region101: #{simclr_graph_cl_forward.1} parent=79 // pred_check
        %p2029 = pneg %p411
      $region102: #{simclr_graph_cl_forward.1} parent=79 // pred_check_branch
        %2031 = sbr.rel (%p2029) target = $region104
      $region103: #{simclr_graph_cl_forward.1} parent=79 // pred_region
        _
      $region104: #{simclr_graph_cl_forward.1} parent=79 // pred_fallthru
        _
      // Predicated region
      $region105: #{simclr_graph_cl_forward.1} parent=79 // pred_check
        %p2032 = pneg %p411
      $region106: #{simclr_graph_cl_forward.1} parent=79 // pred_check_branch
        %2034 = sbr.rel (%p2032) target = $region108
      $region107: #{simclr_graph_cl_forward.1} parent=79 // pred_region
        _
      $region108: #{simclr_graph_cl_forward.1} parent=79 // pred_fallthru
        _
    $region80: #{simclr_graph_cl_forward.1} parent=5 // pred_fallthru
      _
    %p2035 = scmp.le.s32.totalorder 2, %s21
    // Predicated region
    $region109: #{simclr_graph_cl_forward.1} parent=5 // pred_check
      %p2036 = pneg %p2035
    $region110: #{simclr_graph_cl_forward.1} parent=5 // pred_check_branch
      %2038 = sbr.rel (%p2036) target = $region112
    $region111: #{simclr_graph_cl_forward.1} parent=5 // pred_region
      %s2039 = ssub.s32 %s21, 2
    $region112: #{simclr_graph_cl_forward.1} parent=5 // pred_fallthru
      _
  $region6: #{simclr_graph_cl_forward.1} parent=0 // loop_footer
    %s25 = sadd.s32 1, %s21
  $region7: #{simclr_graph_cl_forward.1} parent=0 // loop_footer_branch
    %20 = sbr.rel target = $region3
  $region8: #{simclr_graph_cl_forward.1} parent=0 // loop_exit
    _

</llo_original>
